<compile_context>
chip_gen: v7x
topology: tpu7x:2x2x1
jax: 0.10.0
libtpu: 0.0.40
codegen_flags: <defaults>
</compile_context>

<pallas_src>
import math
import jax
import jax.numpy as jnp
from jax.experimental import pallas as pl
from jax.experimental.pallas import tpu as pltpu

# ---- module-consistent sizes -----------------------------------------------------------
D_MODEL = 32
D_FF = 64
NUM_HEADS = 4
D_K = D_MODEL // NUM_HEADS          # 8 (== SEQ)
SEQ = 8
BATCH = 2
LN_EPS = 1e-5
SCALE = 1.0 / math.sqrt(D_K)

SLAB_W = 64                         # lane width of the packed parameter slab

# ---- packed parameter slab layout (row offsets; every block starts at lane 0) ----------
_SLAB_LAYOUT = [
    ("sa_wq", 32), ("sa_wk", 32), ("sa_wv", 32), ("sa_wo", 32),
    ("ca_wq", 32), ("ca_wk", 32), ("ca_wv", 32), ("ca_wo", 32),
    ("ff_w1", 32),             # (32, 64)
    ("ff_w2", 64),             # (64, 32)
    ("rpe_w2big", 64),         # kron(rpe_w2, I8)   (64, 32)
    ("rpe_w1big", 8),          # kron(rpe_w1, I8)   (8, 64)
    ("bd_mask", 32),           # block-diagonal mask (32, 32): [i, j] = (i//8 == j//8)
    ("sa_bq", 1), ("sa_bk", 1), ("sa_bv", 1), ("sa_bo", 1),
    ("ca_bq", 1), ("ca_bk", 1), ("ca_bv", 1), ("ca_bo", 1),
    ("ff_b1", 1), ("ff_b2", 1),
    ("rpe_b1lane", 1), ("rpe_b2lane", 1),
    ("n1_g", 1), ("n1_b", 1), ("n2_g", 1), ("n2_b", 1), ("n3_g", 1), ("n3_b", 1),
]
ROW = {}
_r = 0
for _name, _nrows in _SLAB_LAYOUT:
    ROW[_name] = _r
    _r += _nrows
SLAB_ROWS = ((_r + 7) // 8) * 8     # 480

PARAM_ORDER = [
    "sa_wq", "sa_bq", "sa_wk", "sa_bk", "sa_wv", "sa_bv", "sa_wo", "sa_bo",
    "rpe_w1", "rpe_b1", "rpe_w2", "rpe_b2",
    "ca_wq", "ca_bq", "ca_wk", "ca_bk", "ca_wv", "ca_bv", "ca_wo", "ca_bo",
    "ff_w1", "ff_b1", "ff_w2", "ff_b2",
    "n1_g", "n1_b", "n2_g", "n2_b", "n3_g", "n3_b",
]
PARAM_SHAPES = {
    **{n: (D_MODEL, D_MODEL) for n in ["sa_wq", "sa_wk", "sa_wv", "sa_wo",
                                       "ca_wq", "ca_wk", "ca_wv", "ca_wo"]},
    **{n: (1, D_MODEL) for n in ["sa_bq", "sa_bk", "sa_bv", "sa_bo",
                                 "ca_bq", "ca_bk", "ca_bv", "ca_bo",
                                 "ff_b2", "n1_g", "n1_b", "n2_g", "n2_b", "n3_g", "n3_b"]},
    "rpe_w1": (1, 2 * NUM_HEADS), "rpe_b1": (1, 2 * NUM_HEADS),
    "rpe_w2": (2 * NUM_HEADS, NUM_HEADS), "rpe_b2": (1, NUM_HEADS),
    "ff_w1": (D_MODEL, D_FF), "ff_b1": (1, D_FF),
    "ff_w2": (D_FF, D_MODEL),
}


# ---- the fully fused single-invocation encoder kernel ----------------------------------
def encoder_kernel(x_ref, rel_ref, slab_ref, out_ref):
    f32 = jnp.float32

    def w(name, nrows, ncols):
        r0 = ROW[name]
        return slab_ref[r0:r0 + nrows, 0:ncols]

    def vec(name, ncols=D_MODEL):
        r0 = ROW[name]
        return slab_ref[r0:r0 + 1, 0:ncols]

    x = x_ref[...]                                          # (B*S, D) = (16, 32)
    bd_mask = w("bd_mask", D_MODEL, D_MODEL)                # (32, 32)

    def layernorm(v, gname, bname):
        mu = jnp.mean(v, axis=-1, keepdims=True)
        var = jnp.mean((v - mu) ** 2, axis=-1, keepdims=True)
        return (v - mu) * jax.lax.rsqrt(var + LN_EPS) * vec(gname) + vec(bname)

    def mha(xin, pre, rpe):
        # three lane-aligned projections (MXU is idle; avoids lane slicing of a fused QKV)
        q = jnp.dot(xin, w(pre + "_wq", D_MODEL, D_MODEL),
                    preferred_element_type=f32) + vec(pre + "_bq")
        k = jnp.dot(xin, w(pre + "_wk", D_MODEL, D_MODEL),
                    preferred_element_type=f32) + vec(pre + "_bk")
        v = jnp.dot(xin, w(pre + "_wv", D_MODEL, D_MODEL),
                    preferred_element_type=f32) + vec(pre + "_bv")

        s_parts, vbd_parts = [], []
        for b in range(BATCH):                              # static, BATCH = 2
            r0 = b * SEQ
            k_b = k[r0:r0 + SEQ, :]                         # (8, 32) sublane slice (cheap)
            v_b = v[r0:r0 + SEQ, :]
            # block-diagonalize K / V with sublane-aligned copies + one mask multiply:
            # no per-head lane slicing anywhere in the attention.
            kbd = jnp.concatenate([k_b] * NUM_HEADS, axis=0) * bd_mask      # (32, 32)
            vbd = jnp.concatenate([v_b] * NUM_HEADS, axis=0) * bd_mask      # (32, 32)
            vbd_parts.append(vbd)
            # scores for all heads of this batch in one NT matmul -> (S, H*S) = (8, 32)
            s_parts.append(jax.lax.dot_general(
                q[r0:r0 + SEQ, :], kbd, (((1,), (1,)), ((), ())),
                preferred_element_type=f32))
        s = jnp.concatenate(s_parts, axis=0)                # (B*S, H*S) = (16, 32)
        if rpe is not None:
            s = s + rpe                                     # rpe added BEFORE 1/sqrt(d_k)
        s = s * SCALE
        # Batched softmax over all (b, h): a per-row shift is constant within every head
        # group, so the full-row max is a valid stabilizer; per-head denominators come from
        # one MXU matmul with the block mask; the divide runs on the EUP.
        s = s - jnp.max(s, axis=-1, keepdims=True)
        e = jnp.exp(s)
        denom = jnp.dot(e, bd_mask, preferred_element_type=f32)   # per-head sums, broadcast
        p = e * pl.reciprocal(denom, approx=True)
        # probs @ V lands directly in merged-head [h0|h1|h2|h3] lane layout -> W_o applies.
        ctx = jnp.concatenate(
            [jnp.dot(p[b * SEQ:(b + 1) * SEQ, :], vbd_parts[b], preferred_element_type=f32)
             for b in range(BATCH)], axis=0)                # (16, 32)
        return jnp.dot(ctx, w(pre + "_wo", D_MODEL, D_MODEL),
                       preferred_element_type=f32) + vec(pre + "_bo")

    # ---- W_rpe: 1x1 Conv2d(1->2H) + ReLU + 1x1 Conv2d(2H->H), lane-dense / MXU form ----
    # rel (16,8) @ kron(w1,I8) (8,64) -> ReLU -> @ kron(w2,I8) (64,32); result already in
    # the (B*S, H*S) score layout.
    rel = rel_ref[...]                                      # (B*S, S) = (16, 8)
    h1 = jnp.maximum(
        jnp.dot(rel, w("rpe_w1big", SEQ, 2 * NUM_HEADS * SEQ), preferred_element_type=f32)
        + vec("rpe_b1lane", 2 * NUM_HEADS * SEQ), 0.0)
    rpe = (jnp.dot(h1, w("rpe_w2big", 2 * NUM_HEADS * SEQ, NUM_HEADS * SEQ),
                   preferred_element_type=f32)
           + vec("rpe_b2lane", NUM_HEADS * SEQ))            # (16, 32)

    # self-attn (+rpe) -> add&norm ; cross-attn (Q=K=V=x1) -> add&norm ; FF -> add&norm
    # (dropout is the identity at inference time)
    x1 = layernorm(x + mha(x, "sa", rpe), "n1_g", "n1_b")
    x2 = layernorm(x1 + mha(x1, "ca", None), "n2_g", "n2_b")
    ffh = jnp.maximum(jnp.dot(x2, w("ff_w1", D_MODEL, D_FF), preferred_element_type=f32)
                      + vec("ff_b1", D_FF), 0.0)
    ff = jnp.dot(ffh, w("ff_w2", D_FF, D_MODEL), preferred_element_type=f32) + vec("ff_b2")
    x3 = layernorm(x2 + ff, "n3_g", "n3_b")

    out_ref[...] = x3.astype(out_ref.dtype)                 # (B*S, D); reshape in wrapper


# ---- one-time parameter packing (hoisted out of the per-call path) ----------------------
def pack_params(p):
    """Pack all parameters into one (SLAB_ROWS, SLAB_W) f32 VMEM slab.  Call ONCE."""
    eye_s = jnp.eye(SEQ, dtype=jnp.float32)
    mats = dict(p)
    mats["rpe_w1big"] = jnp.kron(p["rpe_w1"].reshape(1, 2 * NUM_HEADS), eye_s)     # (8, 64)
    mats["rpe_w2big"] = jnp.kron(p["rpe_w2"], eye_s)                               # (64, 32)
    mats["rpe_b1lane"] = jnp.repeat(p["rpe_b1"].reshape(-1), SEQ).reshape(1, -1)   # (1, 64)
    mats["rpe_b2lane"] = jnp.repeat(p["rpe_b2"].reshape(-1), SEQ).reshape(1, -1)   # (1, 32)
    mats["bd_mask"] = jnp.kron(jnp.eye(NUM_HEADS, dtype=jnp.float32),
                               jnp.ones((SEQ, SEQ), jnp.float32))                  # (32, 32)
    rows = []
    for name, nrows in _SLAB_LAYOUT:
        m = jnp.asarray(mats[name], jnp.float32)
        if m.ndim == 1:
            m = m.reshape(1, -1)
        assert m.shape[0] == nrows, (name, m.shape)
        rows.append(jnp.pad(m, ((0, 0), (0, SLAB_W - m.shape[1]))))
    slab = jnp.concatenate(rows, axis=0)
    return jnp.pad(slab, ((0, SLAB_ROWS - slab.shape[0]), (0, 0)))


# ---- wrapper ----------------------------------------------------------------------------
@jax.jit
def encoder_forward(x, rel_pos, slab):
    B, S, D = x.shape
    assert (B, S, D) == (BATCH, SEQ, D_MODEL)
    assert slab.shape == (SLAB_ROWS, SLAB_W)
    vspec = pl.BlockSpec(memory_space=pltpu.MemorySpace.VMEM)
    out2d = pl.pallas_call(
        encoder_kernel,
        out_shape=jax.ShapeDtypeStruct((B * S, D), jnp.float32),
        in_specs=[vspec, vspec, vspec],
        out_specs=vspec,
        cost_estimate=pl.CostEstimate(flops=700_000, transcendentals=2_000,
                                      bytes_accessed=130_000),
    )(x.reshape(B * S, D), rel_pos.reshape(B * S, S), slab)
    return out2d.reshape(B, S, D)


# ---- pure-JAX reference (mirrors the PyTorch forward) ------------------------------------
def encoder_reference(x, rel_pos, p):
    B, S, D = x.shape

    def split(t):
        return t.reshape(B, S, NUM_HEADS, D_K).transpose(0, 2, 1, 3)

    def mha(xq, xkv, wq, bq, wk, bk, wv, bv, wo, bo, rpe):
        q, k, v = split(xq @ wq + bq), split(xkv @ wk + bk), split(xkv @ wv + bv)
        scores = jnp.einsum("bhqd,bhkd->bhqk", q, k)
        if rpe is not None:
            scores = scores + rpe
        scores = scores / math.sqrt(D_K)
        probs = jax.nn.softmax(scores, axis=-1)
        out = jnp.einsum("bhqk,bhkd->bhqd", probs, v)
        out = out.transpose(0, 2, 1, 3).reshape(B, S, D_MODEL)
        return out @ wo + bo

    def layernorm(v, g, b):
        mu = jnp.mean(v, axis=-1, keepdims=True)
        var = jnp.mean((v - mu) ** 2, axis=-1, keepdims=True)
        return (v - mu) * jax.lax.rsqrt(var + LN_EPS) * g + b

    h1 = jnp.maximum(rel_pos[..., None] * p["rpe_w1"][0] + p["rpe_b1"][0], 0.0)
    rpe = (h1 @ p["rpe_w2"] + p["rpe_b2"][0]).transpose(0, 3, 1, 2)          # (B, H, S, S)

    a1 = mha(x, x, p["sa_wq"], p["sa_bq"], p["sa_wk"], p["sa_bk"],
             p["sa_wv"], p["sa_bv"], p["sa_wo"], p["sa_bo"], rpe)
    x1 = layernorm(x + a1, p["n1_g"], p["n1_b"])
    a2 = mha(x1, x1, p["ca_wq"], p["ca_bq"], p["ca_wk"], p["ca_bk"],
             p["ca_wv"], p["ca_bv"], p["ca_wo"], p["ca_bo"], None)
    x2 = layernorm(x1 + a2, p["n2_g"], p["n2_b"])
    ff = jnp.maximum(x2 @ p["ff_w1"] + p["ff_b1"], 0.0) @ p["ff_w2"] + p["ff_b2"]
    return layernorm(x2 + ff, p["n3_g"], p["n3_b"])


# ---- deterministic synthetic parameters ---------------------------------------------------
def init_params(key):
    keys = jax.random.split(key, len(PARAM_ORDER))
    params = {}
    for name, k in zip(PARAM_ORDER, keys):
        w = jax.random.normal(k, PARAM_SHAPES[name], jnp.float32) * 0.1
        if name.endswith("_g"):                 # LayerNorm gains centered around 1
            w = w + 1.0
        params[name] = w
    return params


if __name__ == "__main__":
    key = jax.random.PRNGKey(0)
    kx, kr, kp = jax.random.split(key, 3)
    x = jax.random.normal(kx, (BATCH, SEQ, D_MODEL), jnp.float32)
    rel_pos = jax.random.normal(kr, (BATCH, SEQ, SEQ), jnp.float32)
    params = init_params(kp)

    slab = pack_params(params)                     # one-time packing, outside the call path
    out = encoder_forward(x, rel_pos, slab)
    out = jax.block_until_ready(out)

    ref = encoder_reference(x, rel_pos, params)
    assert out.shape == (BATCH, SEQ, D_MODEL)
    err = float(jnp.max(jnp.abs(out - ref)))
    # tolerance accounts for the approximate (EUP) reciprocal in the softmax denominator
    assert err < 2e-3, err

    print("KERNEL_OK")
</pallas_src>

<mosaic_0001>
module attributes {stable_mosaic.version = 11 : i64} {
  func.func @encoder_kernel(%arg0: memref<16x32xf32, #tpu.memory_space<vmem>>, %arg1: memref<16x8xf32, #tpu.memory_space<vmem>>, %arg2: memref<480x64xf32, #tpu.memory_space<vmem>>, %arg3: memref<16x32xf32, #tpu.memory_space<vmem>>) attributes {dimension_semantics = [], scalar_prefetch = 0 : i64, scratch_operands = 0 : i64, tpu.core_type = #tpu.core_type<tc>} {
    %c0 = arith.constant 0 : index
    %c0_0 = arith.constant 0 : index
    %0 = vector.load %arg0[%c0, %c0_0] : memref<16x32xf32, #tpu.memory_space<vmem>>, vector<16x32xf32>
    %c424 = arith.constant 424 : index
    %c0_1 = arith.constant 0 : index
    %1 = vector.load %arg2[%c424, %c0_1] : memref<480x64xf32, #tpu.memory_space<vmem>>, vector<32x32xf32>
    %c0_2 = arith.constant 0 : index
    %c0_3 = arith.constant 0 : index
    %2 = vector.load %arg1[%c0_2, %c0_3] : memref<16x8xf32, #tpu.memory_space<vmem>>, vector<16x8xf32>
    %c416 = arith.constant 416 : index
    %c0_4 = arith.constant 0 : index
    %3 = vector.load %arg2[%c416, %c0_4] : memref<480x64xf32, #tpu.memory_space<vmem>>, vector<8x64xf32>
    %cst = arith.constant dense<0.000000e+00> : vector<16x64xf32>
    %4 = tpu.matmul %2, %3, %cst {dimension_numbers = #tpu.dot_dimension_numbers<[1], [0], [0], [1], [0, 0, 1, 1], [], []>} : vector<16x8xf32>, vector<8x64xf32>, vector<16x64xf32> -> vector<16x64xf32>
    %c466 = arith.constant 466 : index
    %c0_5 = arith.constant 0 : index
    %5 = vector.load %arg2[%c466, %c0_5] : memref<480x64xf32, #tpu.memory_space<vmem>>, vector<1x64xf32>
    %6 = vector.broadcast %5 : vector<1x64xf32> to vector<16x64xf32>
    %7 = arith.addf %4, %6 : vector<16x64xf32>
    %cst_6 = arith.constant 0.000000e+00 : f32
    %8 = vector.broadcast %cst_6 : f32 to vector<16x64xf32>
    %9 = arith.maximumf %7, %8 : vector<16x64xf32>
    %c352 = arith.constant 352 : index
    %c0_7 = arith.constant 0 : index
    %10 = vector.load %arg2[%c352, %c0_7] : memref<480x64xf32, #tpu.memory_space<vmem>>, vector<64x32xf32>
    %cst_8 = arith.constant dense<0.000000e+00> : vector<16x32xf32>
    %11 = tpu.matmul %9, %10, %cst_8 {dimension_numbers = #tpu.dot_dimension_numbers<[1], [0], [0], [1], [0, 0, 1, 1], [], []>} : vector<16x64xf32>, vector<64x32xf32>, vector<16x32xf32> -> vector<16x32xf32>
    %c467 = arith.constant 467 : index
    %c0_9 = arith.constant 0 : index
    %12 = vector.load %arg2[%c467, %c0_9] : memref<480x64xf32, #tpu.memory_space<vmem>>, vector<1x32xf32>
    %13 = vector.broadcast %12 : vector<1x32xf32> to vector<16x32xf32>
    %14 = arith.addf %11, %13 : vector<16x32xf32>
    %c0_10 = arith.constant 0 : index
    %c0_11 = arith.constant 0 : index
    %15 = vector.load %arg2[%c0_10, %c0_11] : memref<480x64xf32, #tpu.memory_space<vmem>>, vector<32x32xf32>
    %cst_12 = arith.constant dense<0.000000e+00> : vector<16x32xf32>
    %16 = tpu.matmul %0, %15, %cst_12 {dimension_numbers = #tpu.dot_dimension_numbers<[1], [0], [0], [1], [0, 0, 1, 1], [], []>} : vector<16x32xf32>, vector<32x32xf32>, vector<16x32xf32> -> vector<16x32xf32>
    %c456 = arith.constant 456 : index
    %c0_13 = arith.constant 0 : index
    %17 = vector.load %arg2[%c456, %c0_13] : memref<480x64xf32, #tpu.memory_space<vmem>>, vector<1x32xf32>
    %18 = vector.broadcast %17 : vector<1x32xf32> to vector<16x32xf32>
    %19 = arith.addf %16, %18 : vector<16x32xf32>
    %c32 = arith.constant 32 : index
    %c0_14 = arith.constant 0 : index
    %20 = vector.load %arg2[%c32, %c0_14] : memref<480x64xf32, #tpu.memory_space<vmem>>, vector<32x32xf32>
    %cst_15 = arith.constant dense<0.000000e+00> : vector<16x32xf32>
    %21 = tpu.matmul %0, %20, %cst_15 {dimension_numbers = #tpu.dot_dimension_numbers<[1], [0], [0], [1], [0, 0, 1, 1], [], []>} : vector<16x32xf32>, vector<32x32xf32>, vector<16x32xf32> -> vector<16x32xf32>
    %c457 = arith.constant 457 : index
    %c0_16 = arith.constant 0 : index
    %22 = vector.load %arg2[%c457, %c0_16] : memref<480x64xf32, #tpu.memory_space<vmem>>, vector<1x32xf32>
    %23 = vector.broadcast %22 : vector<1x32xf32> to vector<16x32xf32>
    %24 = arith.addf %21, %23 : vector<16x32xf32>
    %c64 = arith.constant 64 : index
    %c0_17 = arith.constant 0 : index
    %25 = vector.load %arg2[%c64, %c0_17] : memref<480x64xf32, #tpu.memory_space<vmem>>, vector<32x32xf32>
    %cst_18 = arith.constant dense<0.000000e+00> : vector<16x32xf32>
    %26 = tpu.matmul %0, %25, %cst_18 {dimension_numbers = #tpu.dot_dimension_numbers<[1], [0], [0], [1], [0, 0, 1, 1], [], []>} : vector<16x32xf32>, vector<32x32xf32>, vector<16x32xf32> -> vector<16x32xf32>
    %c458 = arith.constant 458 : index
    %c0_19 = arith.constant 0 : index
    %27 = vector.load %arg2[%c458, %c0_19] : memref<480x64xf32, #tpu.memory_space<vmem>>, vector<1x32xf32>
    %28 = vector.broadcast %27 : vector<1x32xf32> to vector<16x32xf32>
    %29 = arith.addf %26, %28 : vector<16x32xf32>
    %30 = vector.extract_strided_slice %24 {offsets = [0, 0], sizes = [8, 32], strides = [1, 1]} : vector<16x32xf32> to vector<8x32xf32>
    %31 = vector.extract_strided_slice %29 {offsets = [0, 0], sizes = [8, 32], strides = [1, 1]} : vector<16x32xf32> to vector<8x32xf32>
    %32 = tpu.concatenate %30, %30, %30, %30 in 0 : vector<8x32xf32>, vector<8x32xf32>, vector<8x32xf32>, vector<8x32xf32> -> vector<32x32xf32>
    %33 = arith.mulf %32, %1 : vector<32x32xf32>
    %34 = tpu.concatenate %31, %31, %31, %31 in 0 : vector<8x32xf32>, vector<8x32xf32>, vector<8x32xf32>, vector<8x32xf32> -> vector<32x32xf32>
    %35 = arith.mulf %34, %1 : vector<32x32xf32>
    %36 = vector.extract_strided_slice %19 {offsets = [0, 0], sizes = [8, 32], strides = [1, 1]} : vector<16x32xf32> to vector<8x32xf32>
    %cst_20 = arith.constant dense<0.000000e+00> : vector<8x32xf32>
    %37 = tpu.matmul %36, %33, %cst_20 {dimension_numbers = #tpu.dot_dimension_numbers<[1], [1], [0], [0], [0, 0, 1, 0], [], []>} : vector<8x32xf32>, vector<32x32xf32>, vector<8x32xf32> -> vector<8x32xf32>
    %38 = vector.extract_strided_slice %24 {offsets = [8, 0], sizes = [8, 32], strides = [1, 1]} : vector<16x32xf32> to vector<8x32xf32>
    %39 = vector.extract_strided_slice %29 {offsets = [8, 0], sizes = [8, 32], strides = [1, 1]} : vector<16x32xf32> to vector<8x32xf32>
    %40 = tpu.concatenate %38, %38, %38, %38 in 0 : vector<8x32xf32>, vector<8x32xf32>, vector<8x32xf32>, vector<8x32xf32> -> vector<32x32xf32>
    %41 = arith.mulf %40, %1 : vector<32x32xf32>
    %42 = tpu.concatenate %39, %39, %39, %39 in 0 : vector<8x32xf32>, vector<8x32xf32>, vector<8x32xf32>, vector<8x32xf32> -> vector<32x32xf32>
    %43 = arith.mulf %42, %1 : vector<32x32xf32>
    %44 = vector.extract_strided_slice %19 {offsets = [8, 0], sizes = [8, 32], strides = [1, 1]} : vector<16x32xf32> to vector<8x32xf32>
    %cst_21 = arith.constant dense<0.000000e+00> : vector<8x32xf32>
    %45 = tpu.matmul %44, %41, %cst_21 {dimension_numbers = #tpu.dot_dimension_numbers<[1], [1], [0], [0], [0, 0, 1, 0], [], []>} : vector<8x32xf32>, vector<32x32xf32>, vector<8x32xf32> -> vector<8x32xf32>
    %46 = tpu.concatenate %37, %45 in 0 : vector<8x32xf32>, vector<8x32xf32> -> vector<16x32xf32>
    %47 = arith.addf %46, %14 : vector<16x32xf32>
    %cst_22 = arith.constant 0.353553385 : f32
    %48 = vector.broadcast %cst_22 : f32 to vector<16x32xf32>
    %49 = arith.mulf %47, %48 : vector<16x32xf32>
    %cst_23 = arith.constant dense<0xFF800000> : vector<16xf32>
    %50 = vector.multi_reduction <maximumf>, %49, %cst_23 [1] : vector<16x32xf32> to vector<16xf32>
    %51 = vector.shape_cast %50 : vector<16xf32> to vector<16x1xf32>
    %52 = vector.broadcast %51 : vector<16x1xf32> to vector<16x32xf32>
    %53 = arith.subf %49, %52 : vector<16x32xf32>
    %54 = math.exp %53 : vector<16x32xf32>
    %cst_24 = arith.constant dense<0.000000e+00> : vector<16x32xf32>
    %55 = tpu.matmul %54, %1, %cst_24 {dimension_numbers = #tpu.dot_dimension_numbers<[1], [0], [0], [1], [0, 0, 1, 1], [], []>} : vector<16x32xf32>, vector<32x32xf32>, vector<16x32xf32> -> vector<16x32xf32>
    %56 = tpu.reciprocal %55 {approx = true} : vector<16x32xf32> -> vector<16x32xf32>
    %57 = arith.mulf %54, %56 : vector<16x32xf32>
    %58 = vector.extract_strided_slice %57 {offsets = [0, 0], sizes = [8, 32], strides = [1, 1]} : vector<16x32xf32> to vector<8x32xf32>
    %cst_25 = arith.constant dense<0.000000e+00> : vector<8x32xf32>
    %59 = tpu.matmul %58, %35, %cst_25 {dimension_numbers = #tpu.dot_dimension_numbers<[1], [0], [0], [1], [0, 0, 1, 1], [], []>} : vector<8x32xf32>, vector<32x32xf32>, vector<8x32xf32> -> vector<8x32xf32>
    %60 = vector.extract_strided_slice %57 {offsets = [8, 0], sizes = [8, 32], strides = [1, 1]} : vector<16x32xf32> to vector<8x32xf32>
    %cst_26 = arith.constant dense<0.000000e+00> : vector<8x32xf32>
    %61 = tpu.matmul %60, %43, %cst_26 {dimension_numbers = #tpu.dot_dimension_numbers<[1], [0], [0], [1], [0, 0, 1, 1], [], []>} : vector<8x32xf32>, vector<32x32xf32>, vector<8x32xf32> -> vector<8x32xf32>
    %62 = tpu.concatenate %59, %61 in 0 : vector<8x32xf32>, vector<8x32xf32> -> vector<16x32xf32>
    %c96 = arith.constant 96 : index
    %c0_27 = arith.constant 0 : index
    %63 = vector.load %arg2[%c96, %c0_27] : memref<480x64xf32, #tpu.memory_space<vmem>>, vector<32x32xf32>
    %cst_28 = arith.constant dense<0.000000e+00> : vector<16x32xf32>
    %64 = tpu.matmul %62, %63, %cst_28 {dimension_numbers = #tpu.dot_dimension_numbers<[1], [0], [0], [1], [0, 0, 1, 1], [], []>} : vector<16x32xf32>, vector<32x32xf32>, vector<16x32xf32> -> vector<16x32xf32>
    %c459 = arith.constant 459 : index
    %c0_29 = arith.constant 0 : index
    %65 = vector.load %arg2[%c459, %c0_29] : memref<480x64xf32, #tpu.memory_space<vmem>>, vector<1x32xf32>
    %66 = vector.broadcast %65 : vector<1x32xf32> to vector<16x32xf32>
    %67 = arith.addf %64, %66 : vector<16x32xf32>
    %68 = arith.addf %0, %67 : vector<16x32xf32>
    %cst_30 = arith.constant dense<0.000000e+00> : vector<16xf32>
    %69 = vector.multi_reduction <add>, %68, %cst_30 [1] : vector<16x32xf32> to vector<16xf32>
    %70 = vector.shape_cast %69 : vector<16xf32> to vector<16x1xf32>
    %cst_31 = arith.constant 3.200000e+01 : f32
    %71 = vector.broadcast %cst_31 : f32 to vector<16x1xf32>
    %72 = arith.divf %70, %71 : vector<16x1xf32>
    %73 = vector.broadcast %72 : vector<16x1xf32> to vector<16x32xf32>
    %74 = arith.subf %68, %73 : vector<16x32xf32>
    %75 = arith.mulf %74, %74 : vector<16x32xf32>
    %cst_32 = arith.constant dense<0.000000e+00> : vector<16xf32>
    %76 = vector.multi_reduction <add>, %75, %cst_32 [1] : vector<16x32xf32> to vector<16xf32>
    %77 = vector.shape_cast %76 : vector<16xf32> to vector<16x1xf32>
    %cst_33 = arith.constant 3.200000e+01 : f32
    %78 = vector.broadcast %cst_33 : f32 to vector<16x1xf32>
    %79 = arith.divf %77, %78 : vector<16x1xf32>
    %80 = vector.broadcast %72 : vector<16x1xf32> to vector<16x32xf32>
    %81 = arith.subf %68, %80 : vector<16x32xf32>
    %cst_34 = arith.constant 9.99999974E-6 : f32
    %82 = vector.broadcast %cst_34 : f32 to vector<16x1xf32>
    %83 = arith.addf %79, %82 : vector<16x1xf32>
    %84 = math.rsqrt %83 : vector<16x1xf32>
    %85 = vector.broadcast %84 : vector<16x1xf32> to vector<16x32xf32>
    %86 = arith.mulf %81, %85 : vector<16x32xf32>
    %c468 = arith.constant 468 : index
    %c0_35 = arith.constant 0 : index
    %87 = vector.load %arg2[%c468, %c0_35] : memref<480x64xf32, #tpu.memory_space<vmem>>, vector<1x32xf32>
    %88 = vector.broadcast %87 : vector<1x32xf32> to vector<16x32xf32>
    %89 = arith.mulf %86, %88 : vector<16x32xf32>
    %c469 = arith.constant 469 : index
    %c0_36 = arith.constant 0 : index
    %90 = vector.load %arg2[%c469, %c0_36] : memref<480x64xf32, #tpu.memory_space<vmem>>, vector<1x32xf32>
    %91 = vector.broadcast %90 : vector<1x32xf32> to vector<16x32xf32>
    %92 = arith.addf %89, %91 : vector<16x32xf32>
    %c128 = arith.constant 128 : index
    %c0_37 = arith.constant 0 : index
    %93 = vector.load %arg2[%c128, %c0_37] : memref<480x64xf32, #tpu.memory_space<vmem>>, vector<32x32xf32>
    %cst_38 = arith.constant dense<0.000000e+00> : vector<16x32xf32>
    %94 = tpu.matmul %92, %93, %cst_38 {dimension_numbers = #tpu.dot_dimension_numbers<[1], [0], [0], [1], [0, 0, 1, 1], [], []>} : vector<16x32xf32>, vector<32x32xf32>, vector<16x32xf32> -> vector<16x32xf32>
    %c460 = arith.constant 460 : index
    %c0_39 = arith.constant 0 : index
    %95 = vector.load %arg2[%c460, %c0_39] : memref<480x64xf32, #tpu.memory_space<vmem>>, vector<1x32xf32>
    %96 = vector.broadcast %95 : vector<1x32xf32> to vector<16x32xf32>
    %97 = arith.addf %94, %96 : vector<16x32xf32>
    %c160 = arith.constant 160 : index
    %c0_40 = arith.constant 0 : index
    %98 = vector.load %arg2[%c160, %c0_40] : memref<480x64xf32, #tpu.memory_space<vmem>>, vector<32x32xf32>
    %cst_41 = arith.constant dense<0.000000e+00> : vector<16x32xf32>
    %99 = tpu.matmul %92, %98, %cst_41 {dimension_numbers = #tpu.dot_dimension_numbers<[1], [0], [0], [1], [0, 0, 1, 1], [], []>} : vector<16x32xf32>, vector<32x32xf32>, vector<16x32xf32> -> vector<16x32xf32>
    %c461 = arith.constant 461 : index
    %c0_42 = arith.constant 0 : index
    %100 = vector.load %arg2[%c461, %c0_42] : memref<480x64xf32, #tpu.memory_space<vmem>>, vector<1x32xf32>
    %101 = vector.broadcast %100 : vector<1x32xf32> to vector<16x32xf32>
    %102 = arith.addf %99, %101 : vector<16x32xf32>
    %c192 = arith.constant 192 : index
    %c0_43 = arith.constant 0 : index
    %103 = vector.load %arg2[%c192, %c0_43] : memref<480x64xf32, #tpu.memory_space<vmem>>, vector<32x32xf32>
    %cst_44 = arith.constant dense<0.000000e+00> : vector<16x32xf32>
    %104 = tpu.matmul %92, %103, %cst_44 {dimension_numbers = #tpu.dot_dimension_numbers<[1], [0], [0], [1], [0, 0, 1, 1], [], []>} : vector<16x32xf32>, vector<32x32xf32>, vector<16x32xf32> -> vector<16x32xf32>
    %c462 = arith.constant 462 : index
    %c0_45 = arith.constant 0 : index
    %105 = vector.load %arg2[%c462, %c0_45] : memref<480x64xf32, #tpu.memory_space<vmem>>, vector<1x32xf32>
    %106 = vector.broadcast %105 : vector<1x32xf32> to vector<16x32xf32>
    %107 = arith.addf %104, %106 : vector<16x32xf32>
    %108 = vector.extract_strided_slice %102 {offsets = [0, 0], sizes = [8, 32], strides = [1, 1]} : vector<16x32xf32> to vector<8x32xf32>
    %109 = vector.extract_strided_slice %107 {offsets = [0, 0], sizes = [8, 32], strides = [1, 1]} : vector<16x32xf32> to vector<8x32xf32>
    %110 = tpu.concatenate %108, %108, %108, %108 in 0 : vector<8x32xf32>, vector<8x32xf32>, vector<8x32xf32>, vector<8x32xf32> -> vector<32x32xf32>
    %111 = arith.mulf %110, %1 : vector<32x32xf32>
    %112 = tpu.concatenate %109, %109, %109, %109 in 0 : vector<8x32xf32>, vector<8x32xf32>, vector<8x32xf32>, vector<8x32xf32> -> vector<32x32xf32>
    %113 = arith.mulf %112, %1 : vector<32x32xf32>
    %114 = vector.extract_strided_slice %97 {offsets = [0, 0], sizes = [8, 32], strides = [1, 1]} : vector<16x32xf32> to vector<8x32xf32>
    %cst_46 = arith.constant dense<0.000000e+00> : vector<8x32xf32>
    %115 = tpu.matmul %114, %111, %cst_46 {dimension_numbers = #tpu.dot_dimension_numbers<[1], [1], [0], [0], [0, 0, 1, 0], [], []>} : vector<8x32xf32>, vector<32x32xf32>, vector<8x32xf32> -> vector<8x32xf32>
    %116 = vector.extract_strided_slice %102 {offsets = [8, 0], sizes = [8, 32], strides = [1, 1]} : vector<16x32xf32> to vector<8x32xf32>
    %117 = vector.extract_strided_slice %107 {offsets = [8, 0], sizes = [8, 32], strides = [1, 1]} : vector<16x32xf32> to vector<8x32xf32>
    %118 = tpu.concatenate %116, %116, %116, %116 in 0 : vector<8x32xf32>, vector<8x32xf32>, vector<8x32xf32>, vector<8x32xf32> -> vector<32x32xf32>
    %119 = arith.mulf %118, %1 : vector<32x32xf32>
    %120 = tpu.concatenate %117, %117, %117, %117 in 0 : vector<8x32xf32>, vector<8x32xf32>, vector<8x32xf32>, vector<8x32xf32> -> vector<32x32xf32>
    %121 = arith.mulf %120, %1 : vector<32x32xf32>
    %122 = vector.extract_strided_slice %97 {offsets = [8, 0], sizes = [8, 32], strides = [1, 1]} : vector<16x32xf32> to vector<8x32xf32>
    %cst_47 = arith.constant dense<0.000000e+00> : vector<8x32xf32>
    %123 = tpu.matmul %122, %119, %cst_47 {dimension_numbers = #tpu.dot_dimension_numbers<[1], [1], [0], [0], [0, 0, 1, 0], [], []>} : vector<8x32xf32>, vector<32x32xf32>, vector<8x32xf32> -> vector<8x32xf32>
    %124 = tpu.concatenate %115, %123 in 0 : vector<8x32xf32>, vector<8x32xf32> -> vector<16x32xf32>
    %cst_48 = arith.constant 0.353553385 : f32
    %125 = vector.broadcast %cst_48 : f32 to vector<16x32xf32>
    %126 = arith.mulf %124, %125 : vector<16x32xf32>
    %cst_49 = arith.constant dense<0xFF800000> : vector<16xf32>
    %127 = vector.multi_reduction <maximumf>, %126, %cst_49 [1] : vector<16x32xf32> to vector<16xf32>
    %128 = vector.shape_cast %127 : vector<16xf32> to vector<16x1xf32>
    %129 = vector.broadcast %128 : vector<16x1xf32> to vector<16x32xf32>
    %130 = arith.subf %126, %129 : vector<16x32xf32>
    %131 = math.exp %130 : vector<16x32xf32>
    %cst_50 = arith.constant dense<0.000000e+00> : vector<16x32xf32>
    %132 = tpu.matmul %131, %1, %cst_50 {dimension_numbers = #tpu.dot_dimension_numbers<[1], [0], [0], [1], [0, 0, 1, 1], [], []>} : vector<16x32xf32>, vector<32x32xf32>, vector<16x32xf32> -> vector<16x32xf32>
    %133 = tpu.reciprocal %132 {approx = true} : vector<16x32xf32> -> vector<16x32xf32>
    %134 = arith.mulf %131, %133 : vector<16x32xf32>
    %135 = vector.extract_strided_slice %134 {offsets = [0, 0], sizes = [8, 32], strides = [1, 1]} : vector<16x32xf32> to vector<8x32xf32>
    %cst_51 = arith.constant dense<0.000000e+00> : vector<8x32xf32>
    %136 = tpu.matmul %135, %113, %cst_51 {dimension_numbers = #tpu.dot_dimension_numbers<[1], [0], [0], [1], [0, 0, 1, 1], [], []>} : vector<8x32xf32>, vector<32x32xf32>, vector<8x32xf32> -> vector<8x32xf32>
    %137 = vector.extract_strided_slice %134 {offsets = [8, 0], sizes = [8, 32], strides = [1, 1]} : vector<16x32xf32> to vector<8x32xf32>
    %cst_52 = arith.constant dense<0.000000e+00> : vector<8x32xf32>
    %138 = tpu.matmul %137, %121, %cst_52 {dimension_numbers = #tpu.dot_dimension_numbers<[1], [0], [0], [1], [0, 0, 1, 1], [], []>} : vector<8x32xf32>, vector<32x32xf32>, vector<8x32xf32> -> vector<8x32xf32>
    %139 = tpu.concatenate %136, %138 in 0 : vector<8x32xf32>, vector<8x32xf32> -> vector<16x32xf32>
    %c224 = arith.constant 224 : index
    %c0_53 = arith.constant 0 : index
    %140 = vector.load %arg2[%c224, %c0_53] : memref<480x64xf32, #tpu.memory_space<vmem>>, vector<32x32xf32>
    %cst_54 = arith.constant dense<0.000000e+00> : vector<16x32xf32>
    %141 = tpu.matmul %139, %140, %cst_54 {dimension_numbers = #tpu.dot_dimension_numbers<[1], [0], [0], [1], [0, 0, 1, 1], [], []>} : vector<16x32xf32>, vector<32x32xf32>, vector<16x32xf32> -> vector<16x32xf32>
    %c463 = arith.constant 463 : index
    %c0_55 = arith.constant 0 : index
    %142 = vector.load %arg2[%c463, %c0_55] : memref<480x64xf32, #tpu.memory_space<vmem>>, vector<1x32xf32>
    %143 = vector.broadcast %142 : vector<1x32xf32> to vector<16x32xf32>
    %144 = arith.addf %141, %143 : vector<16x32xf32>
    %145 = arith.addf %92, %144 : vector<16x32xf32>
    %cst_56 = arith.constant dense<0.000000e+00> : vector<16xf32>
    %146 = vector.multi_reduction <add>, %145, %cst_56 [1] : vector<16x32xf32> to vector<16xf32>
    %147 = vector.shape_cast %146 : vector<16xf32> to vector<16x1xf32>
    %cst_57 = arith.constant 3.200000e+01 : f32
    %148 = vector.broadcast %cst_57 : f32 to vector<16x1xf32>
    %149 = arith.divf %147, %148 : vector<16x1xf32>
    %150 = vector.broadcast %149 : vector<16x1xf32> to vector<16x32xf32>
    %151 = arith.subf %145, %150 : vector<16x32xf32>
    %152 = arith.mulf %151, %151 : vector<16x32xf32>
    %cst_58 = arith.constant dense<0.000000e+00> : vector<16xf32>
    %153 = vector.multi_reduction <add>, %152, %cst_58 [1] : vector<16x32xf32> to vector<16xf32>
    %154 = vector.shape_cast %153 : vector<16xf32> to vector<16x1xf32>
    %cst_59 = arith.constant 3.200000e+01 : f32
    %155 = vector.broadcast %cst_59 : f32 to vector<16x1xf32>
    %156 = arith.divf %154, %155 : vector<16x1xf32>
    %157 = vector.broadcast %149 : vector<16x1xf32> to vector<16x32xf32>
    %158 = arith.subf %145, %157 : vector<16x32xf32>
    %cst_60 = arith.constant 9.99999974E-6 : f32
    %159 = vector.broadcast %cst_60 : f32 to vector<16x1xf32>
    %160 = arith.addf %156, %159 : vector<16x1xf32>
    %161 = math.rsqrt %160 : vector<16x1xf32>
    %162 = vector.broadcast %161 : vector<16x1xf32> to vector<16x32xf32>
    %163 = arith.mulf %158, %162 : vector<16x32xf32>
    %c470 = arith.constant 470 : index
    %c0_61 = arith.constant 0 : index
    %164 = vector.load %arg2[%c470, %c0_61] : memref<480x64xf32, #tpu.memory_space<vmem>>, vector<1x32xf32>
    %165 = vector.broadcast %164 : vector<1x32xf32> to vector<16x32xf32>
    %166 = arith.mulf %163, %165 : vector<16x32xf32>
    %c471 = arith.constant 471 : index
    %c0_62 = arith.constant 0 : index
    %167 = vector.load %arg2[%c471, %c0_62] : memref<480x64xf32, #tpu.memory_space<vmem>>, vector<1x32xf32>
    %168 = vector.broadcast %167 : vector<1x32xf32> to vector<16x32xf32>
    %169 = arith.addf %166, %168 : vector<16x32xf32>
    %c256 = arith.constant 256 : index
    %c0_63 = arith.constant 0 : index
    %170 = vector.load %arg2[%c256, %c0_63] : memref<480x64xf32, #tpu.memory_space<vmem>>, vector<32x64xf32>
    %cst_64 = arith.constant dense<0.000000e+00> : vector<16x64xf32>
    %171 = tpu.matmul %169, %170, %cst_64 {dimension_numbers = #tpu.dot_dimension_numbers<[1], [0], [0], [1], [0, 0, 1, 1], [], []>} : vector<16x32xf32>, vector<32x64xf32>, vector<16x64xf32> -> vector<16x64xf32>
    %c464 = arith.constant 464 : index
    %c0_65 = arith.constant 0 : index
    %172 = vector.load %arg2[%c464, %c0_65] : memref<480x64xf32, #tpu.memory_space<vmem>>, vector<1x64xf32>
    %173 = vector.broadcast %172 : vector<1x64xf32> to vector<16x64xf32>
    %174 = arith.addf %171, %173 : vector<16x64xf32>
    %cst_66 = arith.constant 0.000000e+00 : f32
    %175 = vector.broadcast %cst_66 : f32 to vector<16x64xf32>
    %176 = arith.maximumf %174, %175 : vector<16x64xf32>
    %c288 = arith.constant 288 : index
    %c0_67 = arith.constant 0 : index
    %177 = vector.load %arg2[%c288, %c0_67] : memref<480x64xf32, #tpu.memory_space<vmem>>, vector<64x32xf32>
    %cst_68 = arith.constant dense<0.000000e+00> : vector<16x32xf32>
    %178 = tpu.matmul %176, %177, %cst_68 {dimension_numbers = #tpu.dot_dimension_numbers<[1], [0], [0], [1], [0, 0, 1, 1], [], []>} : vector<16x64xf32>, vector<64x32xf32>, vector<16x32xf32> -> vector<16x32xf32>
    %c465 = arith.constant 465 : index
    %c0_69 = arith.constant 0 : index
    %179 = vector.load %arg2[%c465, %c0_69] : memref<480x64xf32, #tpu.memory_space<vmem>>, vector<1x32xf32>
    %180 = vector.broadcast %179 : vector<1x32xf32> to vector<16x32xf32>
    %181 = arith.addf %178, %180 : vector<16x32xf32>
    %182 = arith.addf %169, %181 : vector<16x32xf32>
    %cst_70 = arith.constant dense<0.000000e+00> : vector<16xf32>
    %183 = vector.multi_reduction <add>, %182, %cst_70 [1] : vector<16x32xf32> to vector<16xf32>
    %184 = vector.shape_cast %183 : vector<16xf32> to vector<16x1xf32>
    %cst_71 = arith.constant 3.200000e+01 : f32
    %185 = vector.broadcast %cst_71 : f32 to vector<16x1xf32>
    %186 = arith.divf %184, %185 : vector<16x1xf32>
    %187 = vector.broadcast %186 : vector<16x1xf32> to vector<16x32xf32>
    %188 = arith.subf %182, %187 : vector<16x32xf32>
    %189 = arith.mulf %188, %188 : vector<16x32xf32>
    %cst_72 = arith.constant dense<0.000000e+00> : vector<16xf32>
    %190 = vector.multi_reduction <add>, %189, %cst_72 [1] : vector<16x32xf32> to vector<16xf32>
    %191 = vector.shape_cast %190 : vector<16xf32> to vector<16x1xf32>
    %cst_73 = arith.constant 3.200000e+01 : f32
    %192 = vector.broadcast %cst_73 : f32 to vector<16x1xf32>
    %193 = arith.divf %191, %192 : vector<16x1xf32>
    %194 = vector.broadcast %186 : vector<16x1xf32> to vector<16x32xf32>
    %195 = arith.subf %182, %194 : vector<16x32xf32>
    %cst_74 = arith.constant 9.99999974E-6 : f32
    %196 = vector.broadcast %cst_74 : f32 to vector<16x1xf32>
    %197 = arith.addf %193, %196 : vector<16x1xf32>
    %198 = math.rsqrt %197 : vector<16x1xf32>
    %199 = vector.broadcast %198 : vector<16x1xf32> to vector<16x32xf32>
    %200 = arith.mulf %195, %199 : vector<16x32xf32>
    %c472 = arith.constant 472 : index
    %c0_75 = arith.constant 0 : index
    %201 = vector.load %arg2[%c472, %c0_75] : memref<480x64xf32, #tpu.memory_space<vmem>>, vector<1x32xf32>
    %202 = vector.broadcast %201 : vector<1x32xf32> to vector<16x32xf32>
    %203 = arith.mulf %200, %202 : vector<16x32xf32>
    %c473 = arith.constant 473 : index
    %c0_76 = arith.constant 0 : index
    %204 = vector.load %arg2[%c473, %c0_76] : memref<480x64xf32, #tpu.memory_space<vmem>>, vector<1x32xf32>
    %205 = vector.broadcast %204 : vector<1x32xf32> to vector<16x32xf32>
    %206 = arith.addf %203, %205 : vector<16x32xf32>
    %c0_77 = arith.constant 0 : index
    %c0_78 = arith.constant 0 : index
    %207 = vector.load %arg3[%c0_77, %c0_78] : memref<16x32xf32, #tpu.memory_space<vmem>>, vector<16x32xf32>
    tpu.vector_store %arg3[%c0_77, %c0_78], %206 {strides = array<i32>} : memref<16x32xf32, #tpu.memory_space<vmem>>, vector<16x32xf32>,
    return
  }
}

</mosaic_0001>

<llo_original>
// kernel: encoder_forward.1
$region0: #{encoder_forward.1}
  #allocation0 [shape = 'u32[]', space=smem, size = 0x4, offset = 0x4, fixed_abs, tag = 'smem constant byte address 0x4 - core index']
  #allocation1 [shape = 'u32[144,128]{1,0:T(1,128)}', space=vmem, size = 0x12000, scoped, tag = 'internal scratch']
  %s0 = inlined_call_operand.vmem [shape: f32[16,32], index: 0, kind: input, shape index: {}]
  %s1 = inlined_call_operand.vmem [shape: f32[16,8], index: 1, kind: input, shape index: {}]
  %s2 = inlined_call_operand.vmem [shape: f32[480,64], index: 2, kind: input, shape index: {}]
  %s3 = inlined_call_operand.hbm [shape: f32[16,32], index: 3, kind: output, shape index: {}]
  %s4 = sld [smem:[#allocation0]]
  $region22: #{encoder_forward.1} parent=0
    _
  %s6 = ssub.s32 1, %s4
  %s7 = scalar_select 0, %s6, %s4
  $region1: #{encoder_forward.1} parent=0
    #allocation2 [shape = 'u8[8192]{0}', space=vmem, size = 0x2000, scoped, tag = 'output window, operand 0, single buffered']
    #allocation3 [shape = 's32[1]{0}', space=sflag, size = 0x4, scoped, tag = 'scoped memory for encoder_forward.1']
    %8 = vsyncpa [#allocation3], 0
    // Predicated region
    $region2: #{encoder_forward.1} parent=1 // pred_check
      _
    $region3: #{encoder_forward.1} parent=1 // pred_check_branch
      %10 = sbr.rel (0) target = $region5
    $region4: #{encoder_forward.1} parent=1 // pred_region
      _
    $region5: #{encoder_forward.1} parent=1 // pred_fallthru
      _
    // Predicated region
    $region6: #{encoder_forward.1} parent=1 // pred_check
      _
    $region7: #{encoder_forward.1} parent=1 // pred_check_branch
      %12 = sbr.rel (0) target = $region9
    $region8: #{encoder_forward.1} parent=1 // pred_region
      _
    $region9: #{encoder_forward.1} parent=1 // pred_fallthru
      _
    // Predicated region
    $region10: #{encoder_forward.1} parent=1 // pred_check
      _
    $region11: #{encoder_forward.1} parent=1 // pred_check_branch
      %14 = sbr.rel (0) target = $region13
    $region12: #{encoder_forward.1} parent=1 // pred_region
      _
    $region13: #{encoder_forward.1} parent=1 // pred_fallthru
      _
    %v15 = vld [vmem:[%s0] sm:$0xff]
    %v16 = vld [vmem:[%s0 + $0x8] sm:$0xff]
    %v17 = vld [vmem:[%s2 + $0x1a8] sm:$0xff]
    %v18 = vld [vmem:[%s2 + $0x1b0] sm:$0xff]
    %v19 = vld [vmem:[%s2 + $0x1b8] sm:$0xff]
    %v20 = vld [vmem:[%s2 + $0x1c0] sm:$0xff]
    %v21 = vld [vmem:[%s1] sm:$0xff]
    %v22 = vld [vmem:[%s1 + $0x8] sm:$0xff]
    %v23 = vld [vmem:[%s2 + $0x1a0] sm:$0xff]
    %v24 = vld [vmem:[%s2 + $0x1d2] sm:$0x1]
    %v25 = vlaneseq
    %v26 = vshrl.u32 %v25, 7
    %v27 = vsub.s32 0, %v26
    %v28 = vrot.slane %v24, %v27
    %vm29 = vcmask 64512
    %v31 = vsel %vm29, %v21, 0
    %v34 = vsel %vm29, %v22, 0
    %36 = vmatprep.subr.mxu0 0.0
    %37 = vmatpush1.msra.mxu0 %v23
    %38 = vmatprep.subr.mxu0 0.0
    %39 = vmatpush1.msra.mxu0 0.0
    %40 = vmatprep.subr.mxu0 0.0
    %41 = vmatpush1.msra.mxu0 0.0
    %42 = vmatprep.subr.mxu0 0.0
    %43 = vmatpush1.msra.mxu0 0.0
    %44 = vmatprep.subr.mxu0 0.0
    %45 = vmatpush1.msra.mxu0 0.0
    %46 = vmatprep.subr.mxu0 0.0
    %47 = vmatpush1.msra.mxu0 0.0
    %48 = vmatprep.subr.mxu0 0.0
    %49 = vmatpush1.msra.mxu0 0.0
    %50 = vmatprep.subr.mxu0 0.0
    %51 = vmatpush1.msra.mxu0 0.0
    %52 = vmatprep.subr.mxu0 0.0
    %53 = vmatpush1.msra.mxu0 0.0
    %54 = vmatprep.subr.mxu0 0.0
    %55 = vmatpush1.msra.mxu0 0.0
    %56 = vmatprep.subr.mxu0 0.0
    %57 = vmatpush1.msra.mxu0 0.0
    %58 = vmatprep.subr.mxu0 0.0
    %59 = vmatpush1.msra.mxu0 0.0
    %60 = vmatprep.subr.mxu0 0.0
    %61 = vmatpush1.msra.mxu0 0.0
    %62 = vmatprep.subr.mxu0 0.0
    %63 = vmatpush1.msra.mxu0 0.0
    %64 = vmatprep.subr.mxu0 0.0
    %65 = vmatpush1.msra.mxu0 0.0
    %66 = vmatprep.subr.mxu0 0.0
    %67 = vmatpush1.msra.mxu0 0.0
    %68 = vmatprep.subr.mxu0 0.0
    %69 = vmatpush1.msra.mxu0 0.0
    %70 = vmatprep.subr.mxu0 0.0
    %71 = vmatpush1.msra.mxu0 0.0
    %72 = vmatprep.subr.mxu0 0.0
    %73 = vmatpush1.msra.mxu0 0.0
    %74 = vmatprep.subr.mxu0 0.0
    %75 = vmatpush1.msra.mxu0 0.0
    %76 = vmatprep.subr.mxu0 0.0
    %77 = vmatpush1.msra.mxu0 0.0
    %78 = vmatprep.subr.mxu0 0.0
    %79 = vmatpush1.msra.mxu0 0.0
    %80 = vmatprep.subr.mxu0 0.0
    %81 = vmatpush1.msra.mxu0 0.0
    %82 = vmatprep.subr.mxu0 0.0
    %83 = vmatpush1.msra.mxu0 0.0
    %84 = vmatprep.subr.mxu0 0.0
    %85 = vmatpush1.msra.mxu0 0.0
    %86 = vmatprep.subr.mxu0 0.0
    %87 = vmatpush1.msra.mxu0 0.0
    %88 = vmatprep.subr.mxu0 0.0
    %89 = vmatpush1.msra.mxu0 0.0
    %90 = vmatprep.subr.mxu0 0.0
    %91 = vmatpush1.msra.mxu0 0.0
    %92 = vmatprep.subr.mxu0 0.0
    %93 = vmatpush1.msra.mxu0 0.0
    %94 = vmatprep.subr.mxu0 0.0
    %95 = vmatpush1.msra.mxu0 0.0
    %96 = vmatprep.subr.mxu0 0.0
    %97 = vmatpush1.msra.mxu0 0.0
    %98 = vmatprep.subr.mxu0 0.0
    %99 = vmatpush1.msra.mxu0 0.0
    %100 = vmatprep.mubr.f32.mxu0 0.0
    %101 = vmatmul.mubr.f32.gmra.mrb[0].mxu0 %v31
    %v102 = vpop.f32.mrb[0].mxu0
    %v103 = vadd.f32 %v28, %v102
    %v104 = vpop.f32.mrb[0].mxu0
    %105 = vmatprep.mubr.f32.mxu0 0.0
    %106 = vmatmul.mubr.f32.gmra.mrb[0].mxu0 %v34
    %v107 = vpop.f32.mrb[0].mxu0
    %v108 = vadd.f32 %v28, %v107
    %v109 = vpop.f32.mrb[0].mxu0
    %110 = vdwg.mxu0
    %v111 = vmax.f32 %v103, 0.0
    %v112 = vmax.f32 %v108, 0.0
    %v113 = vld [vmem:[%s2 + $0x160] sm:$0xff]
    %v114 = vld [vmem:[%s2 + $0x168] sm:$0xff]
    %v115 = vld [vmem:[%s2 + $0x170] sm:$0xff]
    %v116 = vld [vmem:[%s2 + $0x178] sm:$0xff]
    %v117 = vld [vmem:[%s2 + $0x180] sm:$0xff]
    %v118 = vld [vmem:[%s2 + $0x188] sm:$0xff]
    %v119 = vld [vmem:[%s2 + $0x190] sm:$0xff]
    %v120 = vld [vmem:[%s2 + $0x198] sm:$0xff]
    %v121 = vld [vmem:[%s2 + $0x1d3] sm:$0x1]
    %v122 = vlaneseq
    %v123 = vshrl.u32 %v122, 7
    %v124 = vsub.s32 0, %v123
    %v125 = vrot.slane %v121, %v124
    %vm126 = vcmask 523264
    %v128 = vsel %vm126, %v111, 0
    %v131 = vsel %vm126, %v112, 0
    %133 = vmatprep.subr.mxu0 0.0
    %134 = vmatpush1.msra.mxu0 %v113
    %135 = vmatprep.subr.mxu0 0.0
    %136 = vmatpush1.msra.mxu0 %v114
    %137 = vmatprep.subr.mxu0 0.0
    %138 = vmatpush1.msra.mxu0 %v115
    %139 = vmatprep.subr.mxu0 0.0
    %140 = vmatpush1.msra.mxu0 %v116
    %141 = vmatprep.subr.mxu0 0.0
    %142 = vmatpush1.msra.mxu0 %v117
    %143 = vmatprep.subr.mxu0 0.0
    %144 = vmatpush1.msra.mxu0 %v118
    %145 = vmatprep.subr.mxu0 0.0
    %146 = vmatpush1.msra.mxu0 %v119
    %147 = vmatprep.subr.mxu0 0.0
    %148 = vmatpush1.msra.mxu0 %v120
    %149 = vmatprep.subr.mxu0 0.0
    %150 = vmatpush1.msra.mxu0 0.0
    %151 = vmatprep.subr.mxu0 0.0
    %152 = vmatpush1.msra.mxu0 0.0
    %153 = vmatprep.subr.mxu0 0.0
    %154 = vmatpush1.msra.mxu0 0.0
    %155 = vmatprep.subr.mxu0 0.0
    %156 = vmatpush1.msra.mxu0 0.0
    %157 = vmatprep.subr.mxu0 0.0
    %158 = vmatpush1.msra.mxu0 0.0
    %159 = vmatprep.subr.mxu0 0.0
    %160 = vmatpush1.msra.mxu0 0.0
    %161 = vmatprep.subr.mxu0 0.0
    %162 = vmatpush1.msra.mxu0 0.0
    %163 = vmatprep.subr.mxu0 0.0
    %164 = vmatpush1.msra.mxu0 0.0
    %165 = vmatprep.subr.mxu0 0.0
    %166 = vmatpush1.msra.mxu0 0.0
    %167 = vmatprep.subr.mxu0 0.0
    %168 = vmatpush1.msra.mxu0 0.0
    %169 = vmatprep.subr.mxu0 0.0
    %170 = vmatpush1.msra.mxu0 0.0
    %171 = vmatprep.subr.mxu0 0.0
    %172 = vmatpush1.msra.mxu0 0.0
    %173 = vmatprep.subr.mxu0 0.0
    %174 = vmatpush1.msra.mxu0 0.0
    %175 = vmatprep.subr.mxu0 0.0
    %176 = vmatpush1.msra.mxu0 0.0
    %177 = vmatprep.subr.mxu0 0.0
    %178 = vmatpush1.msra.mxu0 0.0
    %179 = vmatprep.subr.mxu0 0.0
    %180 = vmatpush1.msra.mxu0 0.0
    %181 = vmatprep.subr.mxu0 0.0
    %182 = vmatpush1.msra.mxu0 0.0
    %183 = vmatprep.subr.mxu0 0.0
    %184 = vmatpush1.msra.mxu0 0.0
    %185 = vmatprep.subr.mxu0 0.0
    %186 = vmatpush1.msra.mxu0 0.0
    %187 = vmatprep.subr.mxu0 0.0
    %188 = vmatpush1.msra.mxu0 0.0
    %189 = vmatprep.subr.mxu0 0.0
    %190 = vmatpush1.msra.mxu0 0.0
    %191 = vmatprep.subr.mxu0 0.0
    %192 = vmatpush1.msra.mxu0 0.0
    %193 = vmatprep.subr.mxu0 0.0
    %194 = vmatpush1.msra.mxu0 0.0
    %195 = vmatprep.subr.mxu0 0.0
    %196 = vmatpush1.msra.mxu0 0.0
    %197 = vmatprep.mubr.f32.mxu0 0.0
    %198 = vmatmul.mubr.f32.gmra.mrb[0].mxu0 %v128
    %v199 = vpop.f32.mrb[0].mxu0
    %v200 = vadd.f32 %v125, %v199
    %v201 = vpop.f32.mrb[0].mxu0
    %202 = vmatprep.mubr.f32.mxu0 0.0
    %203 = vmatmul.mubr.f32.gmra.mrb[0].mxu0 %v131
    %v204 = vpop.f32.mrb[0].mxu0
    %v205 = vadd.f32 %v125, %v204
    %v206 = vpop.f32.mrb[0].mxu0
    %207 = vdwg.mxu0
    %v208 = vld [vmem:[%s2] sm:$0xff]
    %v209 = vld [vmem:[%s2 + $0x8] sm:$0xff]
    %v210 = vld [vmem:[%s2 + $0x10] sm:$0xff]
    %v211 = vld [vmem:[%s2 + $0x18] sm:$0xff]
    %v212 = vld [vmem:[%s2 + $0x1c8] sm:$0x1]
    %v213 = vlaneseq
    %v214 = vshrl.u32 %v213, 7
    %v215 = vsub.s32 0, %v214
    %v216 = vrot.slane %v212, %v215
    %vm217 = vcmask 261120
    %v219 = vsel %vm217, %v15, 0
    %v222 = vsel %vm217, %v16, 0
    %224 = vmatprep.subr.mxu0 0.0
    %225 = vmatpush1.msra.mxu0 %v208
    %226 = vmatprep.subr.mxu0 0.0
    %227 = vmatpush1.msra.mxu0 %v209
    %228 = vmatprep.subr.mxu0 0.0
    %229 = vmatpush1.msra.mxu0 %v210
    %230 = vmatprep.subr.mxu0 0.0
    %231 = vmatpush1.msra.mxu0 %v211
    %232 = vmatprep.subr.mxu0 0.0
    %233 = vmatpush1.msra.mxu0 0.0
    %234 = vmatprep.subr.mxu0 0.0
    %235 = vmatpush1.msra.mxu0 0.0
    %236 = vmatprep.subr.mxu0 0.0
    %237 = vmatpush1.msra.mxu0 0.0
    %238 = vmatprep.subr.mxu0 0.0
    %239 = vmatpush1.msra.mxu0 0.0
    %240 = vmatprep.subr.mxu0 0.0
    %241 = vmatpush1.msra.mxu0 0.0
    %242 = vmatprep.subr.mxu0 0.0
    %243 = vmatpush1.msra.mxu0 0.0
    %244 = vmatprep.subr.mxu0 0.0
    %245 = vmatpush1.msra.mxu0 0.0
    %246 = vmatprep.subr.mxu0 0.0
    %247 = vmatpush1.msra.mxu0 0.0
    %248 = vmatprep.subr.mxu0 0.0
    %249 = vmatpush1.msra.mxu0 0.0
    %250 = vmatprep.subr.mxu0 0.0
    %251 = vmatpush1.msra.mxu0 0.0
    %252 = vmatprep.subr.mxu0 0.0
    %253 = vmatpush1.msra.mxu0 0.0
    %254 = vmatprep.subr.mxu0 0.0
    %255 = vmatpush1.msra.mxu0 0.0
    %256 = vmatprep.subr.mxu0 0.0
    %257 = vmatpush1.msra.mxu0 0.0
    %258 = vmatprep.subr.mxu0 0.0
    %259 = vmatpush1.msra.mxu0 0.0
    %260 = vmatprep.subr.mxu0 0.0
    %261 = vmatpush1.msra.mxu0 0.0
    %262 = vmatprep.subr.mxu0 0.0
    %263 = vmatpush1.msra.mxu0 0.0
    %264 = vmatprep.subr.mxu0 0.0
    %265 = vmatpush1.msra.mxu0 0.0
    %266 = vmatprep.subr.mxu0 0.0
    %267 = vmatpush1.msra.mxu0 0.0
    %268 = vmatprep.subr.mxu0 0.0
    %269 = vmatpush1.msra.mxu0 0.0
    %270 = vmatprep.subr.mxu0 0.0
    %271 = vmatpush1.msra.mxu0 0.0
    %272 = vmatprep.subr.mxu0 0.0
    %273 = vmatpush1.msra.mxu0 0.0
    %274 = vmatprep.subr.mxu0 0.0
    %275 = vmatpush1.msra.mxu0 0.0
    %276 = vmatprep.subr.mxu0 0.0
    %277 = vmatpush1.msra.mxu0 0.0
    %278 = vmatprep.subr.mxu0 0.0
    %279 = vmatpush1.msra.mxu0 0.0
    %280 = vmatprep.subr.mxu0 0.0
    %281 = vmatpush1.msra.mxu0 0.0
    %282 = vmatprep.subr.mxu0 0.0
    %283 = vmatpush1.msra.mxu0 0.0
    %284 = vmatprep.subr.mxu0 0.0
    %285 = vmatpush1.msra.mxu0 0.0
    %286 = vmatprep.subr.mxu0 0.0
    %287 = vmatpush1.msra.mxu0 0.0
    %288 = vmatprep.mubr.f32.mxu0 0.0
    %289 = vmatmul.mubr.f32.gmra.mrb[0].mxu0 %v219
    %v290 = vpop.f32.mrb[0].mxu0
    %v291 = vadd.f32 %v216, %v290
    %v292 = vpop.f32.mrb[0].mxu0
    %293 = vmatprep.mubr.f32.mxu0 0.0
    %294 = vmatmul.mubr.f32.gmra.mrb[0].mxu0 %v222
    %v295 = vpop.f32.mrb[0].mxu0
    %v296 = vadd.f32 %v216, %v295
    %v297 = vpop.f32.mrb[0].mxu0
    %298 = vdwg.mxu0
    %v299 = vld [vmem:[%s2 + $0x20] sm:$0xff]
    %v300 = vld [vmem:[%s2 + $0x28] sm:$0xff]
    %v301 = vld [vmem:[%s2 + $0x30] sm:$0xff]
    %v302 = vld [vmem:[%s2 + $0x38] sm:$0xff]
    %v303 = vld [vmem:[%s2 + $0x1c9] sm:$0x1]
    %v304 = vlaneseq
    %v305 = vshrl.u32 %v304, 7
    %v306 = vsub.s32 0, %v305
    %v307 = vrot.slane %v303, %v306
    %308 = vmatprep.subr.mxu0 0.0
    %309 = vmatpush1.msra.mxu0 %v299
    %310 = vmatprep.subr.mxu0 0.0
    %311 = vmatpush1.msra.mxu0 %v300
    %312 = vmatprep.subr.mxu0 0.0
    %313 = vmatpush1.msra.mxu0 %v301
    %314 = vmatprep.subr.mxu0 0.0
    %315 = vmatpush1.msra.mxu0 %v302
    %316 = vmatprep.subr.mxu0 0.0
    %317 = vmatpush1.msra.mxu0 0.0
    %318 = vmatprep.subr.mxu0 0.0
    %319 = vmatpush1.msra.mxu0 0.0
    %320 = vmatprep.subr.mxu0 0.0
    %321 = vmatpush1.msra.mxu0 0.0
    %322 = vmatprep.subr.mxu0 0.0
    %323 = vmatpush1.msra.mxu0 0.0
    %324 = vmatprep.subr.mxu0 0.0
    %325 = vmatpush1.msra.mxu0 0.0
    %326 = vmatprep.subr.mxu0 0.0
    %327 = vmatpush1.msra.mxu0 0.0
    %328 = vmatprep.subr.mxu0 0.0
    %329 = vmatpush1.msra.mxu0 0.0
    %330 = vmatprep.subr.mxu0 0.0
    %331 = vmatpush1.msra.mxu0 0.0
    %332 = vmatprep.subr.mxu0 0.0
    %333 = vmatpush1.msra.mxu0 0.0
    %334 = vmatprep.subr.mxu0 0.0
    %335 = vmatpush1.msra.mxu0 0.0
    %336 = vmatprep.subr.mxu0 0.0
    %337 = vmatpush1.msra.mxu0 0.0
    %338 = vmatprep.subr.mxu0 0.0
    %339 = vmatpush1.msra.mxu0 0.0
    %340 = vmatprep.subr.mxu0 0.0
    %341 = vmatpush1.msra.mxu0 0.0
    %342 = vmatprep.subr.mxu0 0.0
    %343 = vmatpush1.msra.mxu0 0.0
    %344 = vmatprep.subr.mxu0 0.0
    %345 = vmatpush1.msra.mxu0 0.0
    %346 = vmatprep.subr.mxu0 0.0
    %347 = vmatpush1.msra.mxu0 0.0
    %348 = vmatprep.subr.mxu0 0.0
    %349 = vmatpush1.msra.mxu0 0.0
    %350 = vmatprep.subr.mxu0 0.0
    %351 = vmatpush1.msra.mxu0 0.0
    %352 = vmatprep.subr.mxu0 0.0
    %353 = vmatpush1.msra.mxu0 0.0
    %354 = vmatprep.subr.mxu0 0.0
    %355 = vmatpush1.msra.mxu0 0.0
    %356 = vmatprep.subr.mxu0 0.0
    %357 = vmatpush1.msra.mxu0 0.0
    %358 = vmatprep.subr.mxu0 0.0
    %359 = vmatpush1.msra.mxu0 0.0
    %360 = vmatprep.subr.mxu0 0.0
    %361 = vmatpush1.msra.mxu0 0.0
    %362 = vmatprep.subr.mxu0 0.0
    %363 = vmatpush1.msra.mxu0 0.0
    %364 = vmatprep.subr.mxu0 0.0
    %365 = vmatpush1.msra.mxu0 0.0
    %366 = vmatprep.subr.mxu0 0.0
    %367 = vmatpush1.msra.mxu0 0.0
    %368 = vmatprep.subr.mxu0 0.0
    %369 = vmatpush1.msra.mxu0 0.0
    %370 = vmatprep.subr.mxu0 0.0
    %371 = vmatpush1.msra.mxu0 0.0
    %372 = vmatprep.mubr.f32.mxu0 0.0
    %373 = vmatmul.mubr.f32.gmra.mrb[0].mxu0 %v219
    %v374 = vpop.f32.mrb[0].mxu0
    %v375 = vadd.f32 %v307, %v374
    %v376 = vpop.f32.mrb[0].mxu0
    %377 = vmatprep.mubr.f32.mxu0 0.0
    %378 = vmatmul.mubr.f32.gmra.mrb[0].mxu0 %v222
    %v379 = vpop.f32.mrb[0].mxu0
    %v380 = vadd.f32 %v307, %v379
    %v381 = vpop.f32.mrb[0].mxu0
    %382 = vdwg.mxu0
    %v383 = vld [vmem:[%s2 + $0x40] sm:$0xff]
    %v384 = vld [vmem:[%s2 + $0x48] sm:$0xff]
    %v385 = vld [vmem:[%s2 + $0x50] sm:$0xff]
    %v386 = vld [vmem:[%s2 + $0x58] sm:$0xff]
    %v387 = vld [vmem:[%s2 + $0x1ca] sm:$0x1]
    %v388 = vlaneseq
    %v389 = vshrl.u32 %v388, 7
    %v390 = vsub.s32 0, %v389
    %v391 = vrot.slane %v387, %v390
    %392 = vmatprep.subr.mxu0 0.0
    %393 = vmatpush1.msra.mxu0 %v383
    %394 = vmatprep.subr.mxu0 0.0
    %395 = vmatpush1.msra.mxu0 %v384
    %396 = vmatprep.subr.mxu0 0.0
    %397 = vmatpush1.msra.mxu0 %v385
    %398 = vmatprep.subr.mxu0 0.0
    %399 = vmatpush1.msra.mxu0 %v386
    %400 = vmatprep.subr.mxu0 0.0
    %401 = vmatpush1.msra.mxu0 0.0
    %402 = vmatprep.subr.mxu0 0.0
    %403 = vmatpush1.msra.mxu0 0.0
    %404 = vmatprep.subr.mxu0 0.0
    %405 = vmatpush1.msra.mxu0 0.0
    %406 = vmatprep.subr.mxu0 0.0
    %407 = vmatpush1.msra.mxu0 0.0
    %408 = vmatprep.subr.mxu0 0.0
    %409 = vmatpush1.msra.mxu0 0.0
    %410 = vmatprep.subr.mxu0 0.0
    %411 = vmatpush1.msra.mxu0 0.0
    %412 = vmatprep.subr.mxu0 0.0
    %413 = vmatpush1.msra.mxu0 0.0
    %414 = vmatprep.subr.mxu0 0.0
    %415 = vmatpush1.msra.mxu0 0.0
    %416 = vmatprep.subr.mxu0 0.0
    %417 = vmatpush1.msra.mxu0 0.0
    %418 = vmatprep.subr.mxu0 0.0
    %419 = vmatpush1.msra.mxu0 0.0
    %420 = vmatprep.subr.mxu0 0.0
    %421 = vmatpush1.msra.mxu0 0.0
    %422 = vmatprep.subr.mxu0 0.0
    %423 = vmatpush1.msra.mxu0 0.0
    %424 = vmatprep.subr.mxu0 0.0
    %425 = vmatpush1.msra.mxu0 0.0
    %426 = vmatprep.subr.mxu0 0.0
    %427 = vmatpush1.msra.mxu0 0.0
    %428 = vmatprep.subr.mxu0 0.0
    %429 = vmatpush1.msra.mxu0 0.0
    %430 = vmatprep.subr.mxu0 0.0
    %431 = vmatpush1.msra.mxu0 0.0
    %432 = vmatprep.subr.mxu0 0.0
    %433 = vmatpush1.msra.mxu0 0.0
    %434 = vmatprep.subr.mxu0 0.0
    %435 = vmatpush1.msra.mxu0 0.0
    %436 = vmatprep.subr.mxu0 0.0
    %437 = vmatpush1.msra.mxu0 0.0
    %438 = vmatprep.subr.mxu0 0.0
    %439 = vmatpush1.msra.mxu0 0.0
    %440 = vmatprep.subr.mxu0 0.0
    %441 = vmatpush1.msra.mxu0 0.0
    %442 = vmatprep.subr.mxu0 0.0
    %443 = vmatpush1.msra.mxu0 0.0
    %444 = vmatprep.subr.mxu0 0.0
    %445 = vmatpush1.msra.mxu0 0.0
    %446 = vmatprep.subr.mxu0 0.0
    %447 = vmatpush1.msra.mxu0 0.0
    %448 = vmatprep.subr.mxu0 0.0
    %449 = vmatpush1.msra.mxu0 0.0
    %450 = vmatprep.subr.mxu0 0.0
    %451 = vmatpush1.msra.mxu0 0.0
    %452 = vmatprep.subr.mxu0 0.0
    %453 = vmatpush1.msra.mxu0 0.0
    %454 = vmatprep.subr.mxu0 0.0
    %455 = vmatpush1.msra.mxu0 0.0
    %456 = vmatprep.mubr.f32.mxu0 0.0
    %457 = vmatmul.mubr.f32.gmra.mrb[0].mxu0 %v219
    %v458 = vpop.f32.mrb[0].mxu0
    %v459 = vadd.f32 %v391, %v458
    %v460 = vpop.f32.mrb[0].mxu0
    %461 = vmatprep.mubr.f32.mxu0 0.0
    %462 = vmatmul.mubr.f32.gmra.mrb[0].mxu0 %v222
    %v463 = vpop.f32.mrb[0].mxu0
    %v464 = vadd.f32 %v391, %v463
    %v465 = vpop.f32.mrb[0].mxu0
    %466 = vdwg.mxu0
    %v467 = vmul.f32 %v375, %v17
    %v468 = vmul.f32 %v375, %v18
    %v469 = vmul.f32 %v375, %v19
    %v470 = vmul.f32 %v375, %v20
    %v471 = vmul.f32 %v459, %v17
    %v472 = vmul.f32 %v459, %v18
    %v473 = vmul.f32 %v459, %v19
    %v474 = vmul.f32 %v459, %v20
    %v476 = vsel %vm217, %v291, 0
    %v479 = vsel %vm217, %v467, 0
    %v482 = vsel %vm217, %v468, 0
    %v485 = vsel %vm217, %v469, 0
    %v488 = vsel %vm217, %v470, 0
    %490 = vmatprep.subr.mxu0 0.0
    %491 = vmatpush1.xpose.msra.mxu0 %v479
    %492 = vmatprep.subr.mxu0 0.0
    %493 = vmatpush1.xpose.msra.mxu0 %v482
    %494 = vmatprep.subr.mxu0 0.0
    %495 = vmatpush1.xpose.msra.mxu0 %v485
    %496 = vmatprep.subr.mxu0 0.0
    %497 = vmatpush1.xpose.msra.mxu0 %v488
    %498 = vmatprep.subr.mxu0 0.0
    %499 = vmatpush1.xpose.msra.mxu0 0.0
    %500 = vmatprep.subr.mxu0 0.0
    %501 = vmatpush1.xpose.msra.mxu0 0.0
    %502 = vmatprep.subr.mxu0 0.0
    %503 = vmatpush1.xpose.msra.mxu0 0.0
    %504 = vmatprep.subr.mxu0 0.0
    %505 = vmatpush1.xpose.msra.mxu0 0.0
    %506 = vmatprep.subr.mxu0 0.0
    %507 = vmatpush1.xpose.msra.mxu0 0.0
    %508 = vmatprep.subr.mxu0 0.0
    %509 = vmatpush1.xpose.msra.mxu0 0.0
    %510 = vmatprep.subr.mxu0 0.0
    %511 = vmatpush1.xpose.msra.mxu0 0.0
    %512 = vmatprep.subr.mxu0 0.0
    %513 = vmatpush1.xpose.msra.mxu0 0.0
    %514 = vmatprep.subr.mxu0 0.0
    %515 = vmatpush1.xpose.msra.mxu0 0.0
    %516 = vmatprep.subr.mxu0 0.0
    %517 = vmatpush1.xpose.msra.mxu0 0.0
    %518 = vmatprep.subr.mxu0 0.0
    %519 = vmatpush1.xpose.msra.mxu0 0.0
    %520 = vmatprep.subr.mxu0 0.0
    %521 = vmatpush1.xpose.msra.mxu0 0.0
    %522 = vmatprep.subr.mxu0 0.0
    %523 = vmatpush1.xpose.msra.mxu0 0.0
    %524 = vmatprep.subr.mxu0 0.0
    %525 = vmatpush1.xpose.msra.mxu0 0.0
    %526 = vmatprep.subr.mxu0 0.0
    %527 = vmatpush1.xpose.msra.mxu0 0.0
    %528 = vmatprep.subr.mxu0 0.0
    %529 = vmatpush1.xpose.msra.mxu0 0.0
    %530 = vmatprep.subr.mxu0 0.0
    %531 = vmatpush1.xpose.msra.mxu0 0.0
    %532 = vmatprep.subr.mxu0 0.0
    %533 = vmatpush1.xpose.msra.mxu0 0.0
    %534 = vmatprep.subr.mxu0 0.0
    %535 = vmatpush1.xpose.msra.mxu0 0.0
    %536 = vmatprep.subr.mxu0 0.0
    %537 = vmatpush1.xpose.msra.mxu0 0.0
    %538 = vmatprep.subr.mxu0 0.0
    %539 = vmatpush1.xpose.msra.mxu0 0.0
    %540 = vmatprep.subr.mxu0 0.0
    %541 = vmatpush1.xpose.msra.mxu0 0.0
    %542 = vmatprep.subr.mxu0 0.0
    %543 = vmatpush1.xpose.msra.mxu0 0.0
    %544 = vmatprep.subr.mxu0 0.0
    %545 = vmatpush1.xpose.msra.mxu0 0.0
    %546 = vmatprep.subr.mxu0 0.0
    %547 = vmatpush1.xpose.msra.mxu0 0.0
    %548 = vmatprep.subr.mxu0 0.0
    %549 = vmatpush1.xpose.msra.mxu0 0.0
    %550 = vmatprep.subr.mxu0 0.0
    %551 = vmatpush1.xpose.msra.mxu0 0.0
    %552 = vmatprep.subr.mxu0 0.0
    %553 = vmatpush1.xpose.msra.mxu0 0.0
    %554 = vmatprep.mubr.f32.mxu0 0.0
    %555 = vmatmul.mubr.f32.gmra.mrb[0].mxu0 %v476
    %v556 = vpop.f32.mrb[0].mxu0
    %v557 = vadd.f32 0.0, %v556
    %v558 = vpop.f32.mrb[0].mxu0
    %559 = vdwg.mxu0
    %v560 = vmul.f32 %v380, %v17
    %v561 = vmul.f32 %v380, %v18
    %v562 = vmul.f32 %v380, %v19
    %v563 = vmul.f32 %v380, %v20
    %v564 = vmul.f32 %v464, %v17
    %v565 = vmul.f32 %v464, %v18
    %v566 = vmul.f32 %v464, %v19
    %v567 = vmul.f32 %v464, %v20
    %v569 = vsel %vm217, %v296, 0
    %v572 = vsel %vm217, %v560, 0
    %v575 = vsel %vm217, %v561, 0
    %v578 = vsel %vm217, %v562, 0
    %v581 = vsel %vm217, %v563, 0
    %583 = vmatprep.subr.mxu0 0.0
    %584 = vmatpush1.xpose.msra.mxu0 %v572
    %585 = vmatprep.subr.mxu0 0.0
    %586 = vmatpush1.xpose.msra.mxu0 %v575
    %587 = vmatprep.subr.mxu0 0.0
    %588 = vmatpush1.xpose.msra.mxu0 %v578
    %589 = vmatprep.subr.mxu0 0.0
    %590 = vmatpush1.xpose.msra.mxu0 %v581
    %591 = vmatprep.subr.mxu0 0.0
    %592 = vmatpush1.xpose.msra.mxu0 0.0
    %593 = vmatprep.subr.mxu0 0.0
    %594 = vmatpush1.xpose.msra.mxu0 0.0
    %595 = vmatprep.subr.mxu0 0.0
    %596 = vmatpush1.xpose.msra.mxu0 0.0
    %597 = vmatprep.subr.mxu0 0.0
    %598 = vmatpush1.xpose.msra.mxu0 0.0
    %599 = vmatprep.subr.mxu0 0.0
    %600 = vmatpush1.xpose.msra.mxu0 0.0
    %601 = vmatprep.subr.mxu0 0.0
    %602 = vmatpush1.xpose.msra.mxu0 0.0
    %603 = vmatprep.subr.mxu0 0.0
    %604 = vmatpush1.xpose.msra.mxu0 0.0
    %605 = vmatprep.subr.mxu0 0.0
    %606 = vmatpush1.xpose.msra.mxu0 0.0
    %607 = vmatprep.subr.mxu0 0.0
    %608 = vmatpush1.xpose.msra.mxu0 0.0
    %609 = vmatprep.subr.mxu0 0.0
    %610 = vmatpush1.xpose.msra.mxu0 0.0
    %611 = vmatprep.subr.mxu0 0.0
    %612 = vmatpush1.xpose.msra.mxu0 0.0
    %613 = vmatprep.subr.mxu0 0.0
    %614 = vmatpush1.xpose.msra.mxu0 0.0
    %615 = vmatprep.subr.mxu0 0.0
    %616 = vmatpush1.xpose.msra.mxu0 0.0
    %617 = vmatprep.subr.mxu0 0.0
    %618 = vmatpush1.xpose.msra.mxu0 0.0
    %619 = vmatprep.subr.mxu0 0.0
    %620 = vmatpush1.xpose.msra.mxu0 0.0
    %621 = vmatprep.subr.mxu0 0.0
    %622 = vmatpush1.xpose.msra.mxu0 0.0
    %623 = vmatprep.subr.mxu0 0.0
    %624 = vmatpush1.xpose.msra.mxu0 0.0
    %625 = vmatprep.subr.mxu0 0.0
    %626 = vmatpush1.xpose.msra.mxu0 0.0
    %627 = vmatprep.subr.mxu0 0.0
    %628 = vmatpush1.xpose.msra.mxu0 0.0
    %629 = vmatprep.subr.mxu0 0.0
    %630 = vmatpush1.xpose.msra.mxu0 0.0
    %631 = vmatprep.subr.mxu0 0.0
    %632 = vmatpush1.xpose.msra.mxu0 0.0
    %633 = vmatprep.subr.mxu0 0.0
    %634 = vmatpush1.xpose.msra.mxu0 0.0
    %635 = vmatprep.subr.mxu0 0.0
    %636 = vmatpush1.xpose.msra.mxu0 0.0
    %637 = vmatprep.subr.mxu0 0.0
    %638 = vmatpush1.xpose.msra.mxu0 0.0
    %639 = vmatprep.subr.mxu0 0.0
    %640 = vmatpush1.xpose.msra.mxu0 0.0
    %641 = vmatprep.subr.mxu0 0.0
    %642 = vmatpush1.xpose.msra.mxu0 0.0
    %643 = vmatprep.subr.mxu0 0.0
    %644 = vmatpush1.xpose.msra.mxu0 0.0
    %645 = vmatprep.subr.mxu0 0.0
    %646 = vmatpush1.xpose.msra.mxu0 0.0
    %647 = vmatprep.mubr.f32.mxu0 0.0
    %648 = vmatmul.mubr.f32.gmra.mrb[0].mxu0 %v569
    %v649 = vpop.f32.mrb[0].mxu0
    %v650 = vadd.f32 0.0, %v649
    %v651 = vpop.f32.mrb[0].mxu0
    %652 = vdwg.mxu0
    %v653 = vadd.f32 %v557, %v200
    %v654 = vadd.f32 %v650, %v205
    %v655 = vmul.f32 %v653, 0.35355338
    %v656 = vmul.f32 %v654, 0.35355338
    %v657 = vsel %vm217, %v655, -inf
    %658 = vmax.xlane.f32.xlu0 %v657
    %v659 = vpop.xlane.xlu0 %658
    %v660 = vsel %vm217, %v656, -inf
    %661 = vmax.xlane.f32.xlu0 %v660
    %v662 = vpop.xlane.xlu0 %661
    %v663 = vsub.f32 %v655, %v659
    %v664 = vsub.f32 %v656, %v662
    %v665 = vmul.f32 %v663, 1.442695
    %v666 = vpow.pop %v665
    %v667 = vmul.f32 %v664, 1.442695
    %v668 = vpow.pop %v667
    %v670 = vsel %vm217, %v666, 0
    %v673 = vsel %vm217, %v668, 0
    %675 = vmatprep.subr.mxu0 0.0
    %676 = vmatpush1.msra.mxu0 %v17
    %677 = vmatprep.subr.mxu0 0.0
    %678 = vmatpush1.msra.mxu0 %v18
    %679 = vmatprep.subr.mxu0 0.0
    %680 = vmatpush1.msra.mxu0 %v19
    %681 = vmatprep.subr.mxu0 0.0
    %682 = vmatpush1.msra.mxu0 %v20
    %683 = vmatprep.subr.mxu0 0.0
    %684 = vmatpush1.msra.mxu0 0.0
    %685 = vmatprep.subr.mxu0 0.0
    %686 = vmatpush1.msra.mxu0 0.0
    %687 = vmatprep.subr.mxu0 0.0
    %688 = vmatpush1.msra.mxu0 0.0
    %689 = vmatprep.subr.mxu0 0.0
    %690 = vmatpush1.msra.mxu0 0.0
    %691 = vmatprep.subr.mxu0 0.0
    %692 = vmatpush1.msra.mxu0 0.0
    %693 = vmatprep.subr.mxu0 0.0
    %694 = vmatpush1.msra.mxu0 0.0
    %695 = vmatprep.subr.mxu0 0.0
    %696 = vmatpush1.msra.mxu0 0.0
    %697 = vmatprep.subr.mxu0 0.0
    %698 = vmatpush1.msra.mxu0 0.0
    %699 = vmatprep.subr.mxu0 0.0
    %700 = vmatpush1.msra.mxu0 0.0
    %701 = vmatprep.subr.mxu0 0.0
    %702 = vmatpush1.msra.mxu0 0.0
    %703 = vmatprep.subr.mxu0 0.0
    %704 = vmatpush1.msra.mxu0 0.0
    %705 = vmatprep.subr.mxu0 0.0
    %706 = vmatpush1.msra.mxu0 0.0
    %707 = vmatprep.subr.mxu0 0.0
    %708 = vmatpush1.msra.mxu0 0.0
    %709 = vmatprep.subr.mxu0 0.0
    %710 = vmatpush1.msra.mxu0 0.0
    %711 = vmatprep.subr.mxu0 0.0
    %712 = vmatpush1.msra.mxu0 0.0
    %713 = vmatprep.subr.mxu0 0.0
    %714 = vmatpush1.msra.mxu0 0.0
    %715 = vmatprep.subr.mxu0 0.0
    %716 = vmatpush1.msra.mxu0 0.0
    %717 = vmatprep.subr.mxu0 0.0
    %718 = vmatpush1.msra.mxu0 0.0
    %719 = vmatprep.subr.mxu0 0.0
    %720 = vmatpush1.msra.mxu0 0.0
    %721 = vmatprep.subr.mxu0 0.0
    %722 = vmatpush1.msra.mxu0 0.0
    %723 = vmatprep.subr.mxu0 0.0
    %724 = vmatpush1.msra.mxu0 0.0
    %725 = vmatprep.subr.mxu0 0.0
    %726 = vmatpush1.msra.mxu0 0.0
    %727 = vmatprep.subr.mxu0 0.0
    %728 = vmatpush1.msra.mxu0 0.0
    %729 = vmatprep.subr.mxu0 0.0
    %730 = vmatpush1.msra.mxu0 0.0
    %731 = vmatprep.subr.mxu0 0.0
    %732 = vmatpush1.msra.mxu0 0.0
    %733 = vmatprep.subr.mxu0 0.0
    %734 = vmatpush1.msra.mxu0 0.0
    %735 = vmatprep.subr.mxu0 0.0
    %736 = vmatpush1.msra.mxu0 0.0
    %737 = vmatprep.subr.mxu0 0.0
    %738 = vmatpush1.msra.mxu0 0.0
    %739 = vmatprep.mubr.f32.mxu0 0.0
    %740 = vmatmul.mubr.f32.gmra.mrb[0].mxu0 %v670
    %v741 = vpop.f32.mrb[0].mxu0
    %v742 = vadd.f32 0.0, %v741
    %v743 = vpop.f32.mrb[0].mxu0
    %744 = vmatprep.mubr.f32.mxu0 0.0
    %745 = vmatmul.mubr.f32.gmra.mrb[0].mxu0 %v673
    %v746 = vpop.f32.mrb[0].mxu0
    %v747 = vadd.f32 0.0, %v746
    %v748 = vpop.f32.mrb[0].mxu0
    %749 = vdwg.mxu0
    %v750 = vrcp.pop %v742
    %v751 = vrcp.pop %v747
    %v752 = vmul.f32 %v666, %v750
    %v753 = vmul.f32 %v668, %v751
    %v755 = vsel %vm217, %v752, 0
    %757 = vmatprep.subr.mxu0 0.0
    %758 = vmatpush1.msra.mxu0 %v471
    %759 = vmatprep.subr.mxu0 0.0
    %760 = vmatpush1.msra.mxu0 %v472
    %761 = vmatprep.subr.mxu0 0.0
    %762 = vmatpush1.msra.mxu0 %v473
    %763 = vmatprep.subr.mxu0 0.0
    %764 = vmatpush1.msra.mxu0 %v474
    %765 = vmatprep.subr.mxu0 0.0
    %766 = vmatpush1.msra.mxu0 0.0
    %767 = vmatprep.subr.mxu0 0.0
    %768 = vmatpush1.msra.mxu0 0.0
    %769 = vmatprep.subr.mxu0 0.0
    %770 = vmatpush1.msra.mxu0 0.0
    %771 = vmatprep.subr.mxu0 0.0
    %772 = vmatpush1.msra.mxu0 0.0
    %773 = vmatprep.subr.mxu0 0.0
    %774 = vmatpush1.msra.mxu0 0.0
    %775 = vmatprep.subr.mxu0 0.0
    %776 = vmatpush1.msra.mxu0 0.0
    %777 = vmatprep.subr.mxu0 0.0
    %778 = vmatpush1.msra.mxu0 0.0
    %779 = vmatprep.subr.mxu0 0.0
    %780 = vmatpush1.msra.mxu0 0.0
    %781 = vmatprep.subr.mxu0 0.0
    %782 = vmatpush1.msra.mxu0 0.0
    %783 = vmatprep.subr.mxu0 0.0
    %784 = vmatpush1.msra.mxu0 0.0
    %785 = vmatprep.subr.mxu0 0.0
    %786 = vmatpush1.msra.mxu0 0.0
    %787 = vmatprep.subr.mxu0 0.0
    %788 = vmatpush1.msra.mxu0 0.0
    %789 = vmatprep.subr.mxu0 0.0
    %790 = vmatpush1.msra.mxu0 0.0
    %791 = vmatprep.subr.mxu0 0.0
    %792 = vmatpush1.msra.mxu0 0.0
    %793 = vmatprep.subr.mxu0 0.0
    %794 = vmatpush1.msra.mxu0 0.0
    %795 = vmatprep.subr.mxu0 0.0
    %796 = vmatpush1.msra.mxu0 0.0
    %797 = vmatprep.subr.mxu0 0.0
    %798 = vmatpush1.msra.mxu0 0.0
    %799 = vmatprep.subr.mxu0 0.0
    %800 = vmatpush1.msra.mxu0 0.0
    %801 = vmatprep.subr.mxu0 0.0
    %802 = vmatpush1.msra.mxu0 0.0
    %803 = vmatprep.subr.mxu0 0.0
    %804 = vmatpush1.msra.mxu0 0.0
    %805 = vmatprep.subr.mxu0 0.0
    %806 = vmatpush1.msra.mxu0 0.0
    %807 = vmatprep.subr.mxu0 0.0
    %808 = vmatpush1.msra.mxu0 0.0
    %809 = vmatprep.subr.mxu0 0.0
    %810 = vmatpush1.msra.mxu0 0.0
    %811 = vmatprep.subr.mxu0 0.0
    %812 = vmatpush1.msra.mxu0 0.0
    %813 = vmatprep.subr.mxu0 0.0
    %814 = vmatpush1.msra.mxu0 0.0
    %815 = vmatprep.subr.mxu0 0.0
    %816 = vmatpush1.msra.mxu0 0.0
    %817 = vmatprep.subr.mxu0 0.0
    %818 = vmatpush1.msra.mxu0 0.0
    %819 = vmatprep.subr.mxu0 0.0
    %820 = vmatpush1.msra.mxu0 0.0
    %821 = vmatprep.mubr.f32.mxu0 0.0
    %822 = vmatmul.mubr.f32.gmra.mrb[0].mxu0 %v755
    %v823 = vpop.f32.mrb[0].mxu0
    %v824 = vadd.f32 0.0, %v823
    %v825 = vpop.f32.mrb[0].mxu0
    %826 = vdwg.mxu0
    %v828 = vsel %vm217, %v753, 0
    %830 = vmatprep.subr.mxu0 0.0
    %831 = vmatpush1.msra.mxu0 %v564
    %832 = vmatprep.subr.mxu0 0.0
    %833 = vmatpush1.msra.mxu0 %v565
    %834 = vmatprep.subr.mxu0 0.0
    %835 = vmatpush1.msra.mxu0 %v566
    %836 = vmatprep.subr.mxu0 0.0
    %837 = vmatpush1.msra.mxu0 %v567
    %838 = vmatprep.subr.mxu0 0.0
    %839 = vmatpush1.msra.mxu0 0.0
    %840 = vmatprep.subr.mxu0 0.0
    %841 = vmatpush1.msra.mxu0 0.0
    %842 = vmatprep.subr.mxu0 0.0
    %843 = vmatpush1.msra.mxu0 0.0
    %844 = vmatprep.subr.mxu0 0.0
    %845 = vmatpush1.msra.mxu0 0.0
    %846 = vmatprep.subr.mxu0 0.0
    %847 = vmatpush1.msra.mxu0 0.0
    %848 = vmatprep.subr.mxu0 0.0
    %849 = vmatpush1.msra.mxu0 0.0
    %850 = vmatprep.subr.mxu0 0.0
    %851 = vmatpush1.msra.mxu0 0.0
    %852 = vmatprep.subr.mxu0 0.0
    %853 = vmatpush1.msra.mxu0 0.0
    %854 = vmatprep.subr.mxu0 0.0
    %855 = vmatpush1.msra.mxu0 0.0
    %856 = vmatprep.subr.mxu0 0.0
    %857 = vmatpush1.msra.mxu0 0.0
    %858 = vmatprep.subr.mxu0 0.0
    %859 = vmatpush1.msra.mxu0 0.0
    %860 = vmatprep.subr.mxu0 0.0
    %861 = vmatpush1.msra.mxu0 0.0
    %862 = vmatprep.subr.mxu0 0.0
    %863 = vmatpush1.msra.mxu0 0.0
    %864 = vmatprep.subr.mxu0 0.0
    %865 = vmatpush1.msra.mxu0 0.0
    %866 = vmatprep.subr.mxu0 0.0
    %867 = vmatpush1.msra.mxu0 0.0
    %868 = vmatprep.subr.mxu0 0.0
    %869 = vmatpush1.msra.mxu0 0.0
    %870 = vmatprep.subr.mxu0 0.0
    %871 = vmatpush1.msra.mxu0 0.0
    %872 = vmatprep.subr.mxu0 0.0
    %873 = vmatpush1.msra.mxu0 0.0
    %874 = vmatprep.subr.mxu0 0.0
    %875 = vmatpush1.msra.mxu0 0.0
    %876 = vmatprep.subr.mxu0 0.0
    %877 = vmatpush1.msra.mxu0 0.0
    %878 = vmatprep.subr.mxu0 0.0
    %879 = vmatpush1.msra.mxu0 0.0
    %880 = vmatprep.subr.mxu0 0.0
    %881 = vmatpush1.msra.mxu0 0.0
    %882 = vmatprep.subr.mxu0 0.0
    %883 = vmatpush1.msra.mxu0 0.0
    %884 = vmatprep.subr.mxu0 0.0
    %885 = vmatpush1.msra.mxu0 0.0
    %886 = vmatprep.subr.mxu0 0.0
    %887 = vmatpush1.msra.mxu0 0.0
    %888 = vmatprep.subr.mxu0 0.0
    %889 = vmatpush1.msra.mxu0 0.0
    %890 = vmatprep.subr.mxu0 0.0
    %891 = vmatpush1.msra.mxu0 0.0
    %892 = vmatprep.subr.mxu0 0.0
    %893 = vmatpush1.msra.mxu0 0.0
    %894 = vmatprep.mubr.f32.mxu0 0.0
    %895 = vmatmul.mubr.f32.gmra.mrb[0].mxu0 %v828
    %v896 = vpop.f32.mrb[0].mxu0
    %v897 = vadd.f32 0.0, %v896
    %v898 = vpop.f32.mrb[0].mxu0
    %899 = vdwg.mxu0
    %v900 = vld [vmem:[%s2 + $0x60] sm:$0xff]
    %v901 = vld [vmem:[%s2 + $0x68] sm:$0xff]
    %v902 = vld [vmem:[%s2 + $0x70] sm:$0xff]
    %v903 = vld [vmem:[%s2 + $0x78] sm:$0xff]
    %v904 = vld [vmem:[%s2 + $0x1cb] sm:$0x1]
    %v905 = vlaneseq
    %v906 = vshrl.u32 %v905, 7
    %v907 = vsub.s32 0, %v906
    %v908 = vrot.slane %v904, %v907
    %v910 = vsel %vm217, %v824, 0
    %v913 = vsel %vm217, %v897, 0
    %915 = vmatprep.subr.mxu0 0.0
    %916 = vmatpush1.msra.mxu0 %v900
    %917 = vmatprep.subr.mxu0 0.0
    %918 = vmatpush1.msra.mxu0 %v901
    %919 = vmatprep.subr.mxu0 0.0
    %920 = vmatpush1.msra.mxu0 %v902
    %921 = vmatprep.subr.mxu0 0.0
    %922 = vmatpush1.msra.mxu0 %v903
    %923 = vmatprep.subr.mxu0 0.0
    %924 = vmatpush1.msra.mxu0 0.0
    %925 = vmatprep.subr.mxu0 0.0
    %926 = vmatpush1.msra.mxu0 0.0
    %927 = vmatprep.subr.mxu0 0.0
    %928 = vmatpush1.msra.mxu0 0.0
    %929 = vmatprep.subr.mxu0 0.0
    %930 = vmatpush1.msra.mxu0 0.0
    %931 = vmatprep.subr.mxu0 0.0
    %932 = vmatpush1.msra.mxu0 0.0
    %933 = vmatprep.subr.mxu0 0.0
    %934 = vmatpush1.msra.mxu0 0.0
    %935 = vmatprep.subr.mxu0 0.0
    %936 = vmatpush1.msra.mxu0 0.0
    %937 = vmatprep.subr.mxu0 0.0
    %938 = vmatpush1.msra.mxu0 0.0
    %939 = vmatprep.subr.mxu0 0.0
    %940 = vmatpush1.msra.mxu0 0.0
    %941 = vmatprep.subr.mxu0 0.0
    %942 = vmatpush1.msra.mxu0 0.0
    %943 = vmatprep.subr.mxu0 0.0
    %944 = vmatpush1.msra.mxu0 0.0
    %945 = vmatprep.subr.mxu0 0.0
    %946 = vmatpush1.msra.mxu0 0.0
    %947 = vmatprep.subr.mxu0 0.0
    %948 = vmatpush1.msra.mxu0 0.0
    %949 = vmatprep.subr.mxu0 0.0
    %950 = vmatpush1.msra.mxu0 0.0
    %951 = vmatprep.subr.mxu0 0.0
    %952 = vmatpush1.msra.mxu0 0.0
    %953 = vmatprep.subr.mxu0 0.0
    %954 = vmatpush1.msra.mxu0 0.0
    %955 = vmatprep.subr.mxu0 0.0
    %956 = vmatpush1.msra.mxu0 0.0
    %957 = vmatprep.subr.mxu0 0.0
    %958 = vmatpush1.msra.mxu0 0.0
    %959 = vmatprep.subr.mxu0 0.0
    %960 = vmatpush1.msra.mxu0 0.0
    %961 = vmatprep.subr.mxu0 0.0
    %962 = vmatpush1.msra.mxu0 0.0
    %963 = vmatprep.subr.mxu0 0.0
    %964 = vmatpush1.msra.mxu0 0.0
    %965 = vmatprep.subr.mxu0 0.0
    %966 = vmatpush1.msra.mxu0 0.0
    %967 = vmatprep.subr.mxu0 0.0
    %968 = vmatpush1.msra.mxu0 0.0
    %969 = vmatprep.subr.mxu0 0.0
    %970 = vmatpush1.msra.mxu0 0.0
    %971 = vmatprep.subr.mxu0 0.0
    %972 = vmatpush1.msra.mxu0 0.0
    %973 = vmatprep.subr.mxu0 0.0
    %974 = vmatpush1.msra.mxu0 0.0
    %975 = vmatprep.subr.mxu0 0.0
    %976 = vmatpush1.msra.mxu0 0.0
    %977 = vmatprep.subr.mxu0 0.0
    %978 = vmatpush1.msra.mxu0 0.0
    %979 = vmatprep.mubr.f32.mxu0 0.0
    %980 = vmatmul.mubr.f32.gmra.mrb[0].mxu0 %v910
    %v981 = vpop.f32.mrb[0].mxu0
    %v982 = vadd.f32 %v908, %v981
    %v983 = vpop.f32.mrb[0].mxu0
    %984 = vmatprep.mubr.f32.mxu0 0.0
    %985 = vmatmul.mubr.f32.gmra.mrb[0].mxu0 %v913
    %v986 = vpop.f32.mrb[0].mxu0
    %v987 = vadd.f32 %v908, %v986
    %v988 = vpop.f32.mrb[0].mxu0
    %989 = vdwg.mxu0
    %v990 = vadd.f32 %v15, %v982
    %v991 = vadd.f32 %v16, %v987
    %v992 = vsel %vm217, %v990, 0.0
    %993 = vadd.xlane.f32.xlu0 %v992
    %v994 = vpop.xlane.xlu0 %993
    %v995 = vsel %vm217, %v991, 0.0
    %996 = vadd.xlane.f32.xlu0 %v995
    %v997 = vpop.xlane.xlu0 %996
    %v998 = vrcp.pop 32.0
    %v999 = vmul.f32 %v994, %v998
    %v1000 = vmul.f32 %v997, %v998
    %v1001 = vsub.f32 %v990, %v999
    %v1002 = vsub.f32 %v991, %v1000
    %v1003 = vmul.f32 %v1001, %v1001
    %v1004 = vmul.f32 %v1002, %v1002
    %v1005 = vsel %vm217, %v1003, 0.0
    %1006 = vadd.xlane.f32.xlu0 %v1005
    %v1007 = vpop.xlane.xlu0 %1006
    %v1008 = vsel %vm217, %v1004, 0.0
    %1009 = vadd.xlane.f32.xlu0 %v1008
    %v1010 = vpop.xlane.xlu0 %1009
    %v1011 = vmul.f32 %v1007, %v998
    %v1012 = vmul.f32 %v1010, %v998
    %v1013 = vadd.f32 %v1011, 1e-05
    %v1014 = vadd.f32 %v1012, 1e-05
    %v1015 = vrsqrt.pop %v1013
    %v1016 = vrsqrt.pop %v1014
    %v1017 = vmul.f32 %v1001, %v1015
    %v1018 = vmul.f32 %v1002, %v1016
    %v1019 = vld [vmem:[%s2 + $0x1d4] sm:$0x1]
    %v1020 = vlaneseq
    %v1021 = vshrl.u32 %v1020, 7
    %v1022 = vsub.s32 0, %v1021
    %v1023 = vrot.slane %v1019, %v1022
    %v1024 = vmul.f32 %v1017, %v1023
    %v1025 = vmul.f32 %v1018, %v1023
    %v1026 = vld [vmem:[%s2 + $0x1d5] sm:$0x1]
    %v1027 = vlaneseq
    %v1028 = vshrl.u32 %v1027, 7
    %v1029 = vsub.s32 0, %v1028
    %v1030 = vrot.slane %v1026, %v1029
    %v1031 = vadd.f32 %v1024, %v1030
    %v1032 = vadd.f32 %v1025, %v1030
    %v1033 = vld [vmem:[%s2 + $0x80] sm:$0xff]
    %v1034 = vld [vmem:[%s2 + $0x88] sm:$0xff]
    %v1035 = vld [vmem:[%s2 + $0x90] sm:$0xff]
    %v1036 = vld [vmem:[%s2 + $0x98] sm:$0xff]
    %v1037 = vld [vmem:[%s2 + $0x1cc] sm:$0x1]
    %v1038 = vlaneseq
    %v1039 = vshrl.u32 %v1038, 7
    %v1040 = vsub.s32 0, %v1039
    %v1041 = vrot.slane %v1037, %v1040
    %v1043 = vsel %vm217, %v1031, 0
    %v1046 = vsel %vm217, %v1032, 0
    %1048 = vmatprep.subr.mxu0 0.0
    %1049 = vmatpush1.msra.mxu0 %v1033
    %1050 = vmatprep.subr.mxu0 0.0
    %1051 = vmatpush1.msra.mxu0 %v1034
    %1052 = vmatprep.subr.mxu0 0.0
    %1053 = vmatpush1.msra.mxu0 %v1035
    %1054 = vmatprep.subr.mxu0 0.0
    %1055 = vmatpush1.msra.mxu0 %v1036
    %1056 = vmatprep.subr.mxu0 0.0
    %1057 = vmatpush1.msra.mxu0 0.0
    %1058 = vmatprep.subr.mxu0 0.0
    %1059 = vmatpush1.msra.mxu0 0.0
    %1060 = vmatprep.subr.mxu0 0.0
    %1061 = vmatpush1.msra.mxu0 0.0
    %1062 = vmatprep.subr.mxu0 0.0
    %1063 = vmatpush1.msra.mxu0 0.0
    %1064 = vmatprep.subr.mxu0 0.0
    %1065 = vmatpush1.msra.mxu0 0.0
    %1066 = vmatprep.subr.mxu0 0.0
    %1067 = vmatpush1.msra.mxu0 0.0
    %1068 = vmatprep.subr.mxu0 0.0
    %1069 = vmatpush1.msra.mxu0 0.0
    %1070 = vmatprep.subr.mxu0 0.0
    %1071 = vmatpush1.msra.mxu0 0.0
    %1072 = vmatprep.subr.mxu0 0.0
    %1073 = vmatpush1.msra.mxu0 0.0
    %1074 = vmatprep.subr.mxu0 0.0
    %1075 = vmatpush1.msra.mxu0 0.0
    %1076 = vmatprep.subr.mxu0 0.0
    %1077 = vmatpush1.msra.mxu0 0.0
    %1078 = vmatprep.subr.mxu0 0.0
    %1079 = vmatpush1.msra.mxu0 0.0
    %1080 = vmatprep.subr.mxu0 0.0
    %1081 = vmatpush1.msra.mxu0 0.0
    %1082 = vmatprep.subr.mxu0 0.0
    %1083 = vmatpush1.msra.mxu0 0.0
    %1084 = vmatprep.subr.mxu0 0.0
    %1085 = vmatpush1.msra.mxu0 0.0
    %1086 = vmatprep.subr.mxu0 0.0
    %1087 = vmatpush1.msra.mxu0 0.0
    %1088 = vmatprep.subr.mxu0 0.0
    %1089 = vmatpush1.msra.mxu0 0.0
    %1090 = vmatprep.subr.mxu0 0.0
    %1091 = vmatpush1.msra.mxu0 0.0
    %1092 = vmatprep.subr.mxu0 0.0
    %1093 = vmatpush1.msra.mxu0 0.0
    %1094 = vmatprep.subr.mxu0 0.0
    %1095 = vmatpush1.msra.mxu0 0.0
    %1096 = vmatprep.subr.mxu0 0.0
    %1097 = vmatpush1.msra.mxu0 0.0
    %1098 = vmatprep.subr.mxu0 0.0
    %1099 = vmatpush1.msra.mxu0 0.0
    %1100 = vmatprep.subr.mxu0 0.0
    %1101 = vmatpush1.msra.mxu0 0.0
    %1102 = vmatprep.subr.mxu0 0.0
    %1103 = vmatpush1.msra.mxu0 0.0
    %1104 = vmatprep.subr.mxu0 0.0
    %1105 = vmatpush1.msra.mxu0 0.0
    %1106 = vmatprep.subr.mxu0 0.0
    %1107 = vmatpush1.msra.mxu0 0.0
    %1108 = vmatprep.subr.mxu0 0.0
    %1109 = vmatpush1.msra.mxu0 0.0
    %1110 = vmatprep.subr.mxu0 0.0
    %1111 = vmatpush1.msra.mxu0 0.0
    %1112 = vmatprep.mubr.f32.mxu0 0.0
    %1113 = vmatmul.mubr.f32.gmra.mrb[0].mxu0 %v1043
    %v1114 = vpop.f32.mrb[0].mxu0
    %v1115 = vadd.f32 %v1041, %v1114
    %v1116 = vpop.f32.mrb[0].mxu0
    %1117 = vmatprep.mubr.f32.mxu0 0.0
    %1118 = vmatmul.mubr.f32.gmra.mrb[0].mxu0 %v1046
    %v1119 = vpop.f32.mrb[0].mxu0
    %v1120 = vadd.f32 %v1041, %v1119
    %v1121 = vpop.f32.mrb[0].mxu0
    %1122 = vdwg.mxu0
    %v1123 = vld [vmem:[%s2 + $0xa0] sm:$0xff]
    %v1124 = vld [vmem:[%s2 + $0xa8] sm:$0xff]
    %v1125 = vld [vmem:[%s2 + $0xb0] sm:$0xff]
    %v1126 = vld [vmem:[%s2 + $0xb8] sm:$0xff]
    %v1127 = vld [vmem:[%s2 + $0x1cd] sm:$0x1]
    %v1128 = vlaneseq
    %v1129 = vshrl.u32 %v1128, 7
    %v1130 = vsub.s32 0, %v1129
    %v1131 = vrot.slane %v1127, %v1130
    %1132 = vmatprep.subr.mxu0 0.0
    %1133 = vmatpush1.msra.mxu0 %v1123
    %1134 = vmatprep.subr.mxu0 0.0
    %1135 = vmatpush1.msra.mxu0 %v1124
    %1136 = vmatprep.subr.mxu0 0.0
    %1137 = vmatpush1.msra.mxu0 %v1125
    %1138 = vmatprep.subr.mxu0 0.0
    %1139 = vmatpush1.msra.mxu0 %v1126
    %1140 = vmatprep.subr.mxu0 0.0
    %1141 = vmatpush1.msra.mxu0 0.0
    %1142 = vmatprep.subr.mxu0 0.0
    %1143 = vmatpush1.msra.mxu0 0.0
    %1144 = vmatprep.subr.mxu0 0.0
    %1145 = vmatpush1.msra.mxu0 0.0
    %1146 = vmatprep.subr.mxu0 0.0
    %1147 = vmatpush1.msra.mxu0 0.0
    %1148 = vmatprep.subr.mxu0 0.0
    %1149 = vmatpush1.msra.mxu0 0.0
    %1150 = vmatprep.subr.mxu0 0.0
    %1151 = vmatpush1.msra.mxu0 0.0
    %1152 = vmatprep.subr.mxu0 0.0
    %1153 = vmatpush1.msra.mxu0 0.0
    %1154 = vmatprep.subr.mxu0 0.0
    %1155 = vmatpush1.msra.mxu0 0.0
    %1156 = vmatprep.subr.mxu0 0.0
    %1157 = vmatpush1.msra.mxu0 0.0
    %1158 = vmatprep.subr.mxu0 0.0
    %1159 = vmatpush1.msra.mxu0 0.0
    %1160 = vmatprep.subr.mxu0 0.0
    %1161 = vmatpush1.msra.mxu0 0.0
    %1162 = vmatprep.subr.mxu0 0.0
    %1163 = vmatpush1.msra.mxu0 0.0
    %1164 = vmatprep.subr.mxu0 0.0
    %1165 = vmatpush1.msra.mxu0 0.0
    %1166 = vmatprep.subr.mxu0 0.0
    %1167 = vmatpush1.msra.mxu0 0.0
    %1168 = vmatprep.subr.mxu0 0.0
    %1169 = vmatpush1.msra.mxu0 0.0
    %1170 = vmatprep.subr.mxu0 0.0
    %1171 = vmatpush1.msra.mxu0 0.0
    %1172 = vmatprep.subr.mxu0 0.0
    %1173 = vmatpush1.msra.mxu0 0.0
    %1174 = vmatprep.subr.mxu0 0.0
    %1175 = vmatpush1.msra.mxu0 0.0
    %1176 = vmatprep.subr.mxu0 0.0
    %1177 = vmatpush1.msra.mxu0 0.0
    %1178 = vmatprep.subr.mxu0 0.0
    %1179 = vmatpush1.msra.mxu0 0.0
    %1180 = vmatprep.subr.mxu0 0.0
    %1181 = vmatpush1.msra.mxu0 0.0
    %1182 = vmatprep.subr.mxu0 0.0
    %1183 = vmatpush1.msra.mxu0 0.0
    %1184 = vmatprep.subr.mxu0 0.0
    %1185 = vmatpush1.msra.mxu0 0.0
    %1186 = vmatprep.subr.mxu0 0.0
    %1187 = vmatpush1.msra.mxu0 0.0
    %1188 = vmatprep.subr.mxu0 0.0
    %1189 = vmatpush1.msra.mxu0 0.0
    %1190 = vmatprep.subr.mxu0 0.0
    %1191 = vmatpush1.msra.mxu0 0.0
    %1192 = vmatprep.subr.mxu0 0.0
    %1193 = vmatpush1.msra.mxu0 0.0
    %1194 = vmatprep.subr.mxu0 0.0
    %1195 = vmatpush1.msra.mxu0 0.0
    %1196 = vmatprep.mubr.f32.mxu0 0.0
    %1197 = vmatmul.mubr.f32.gmra.mrb[0].mxu0 %v1043
    %v1198 = vpop.f32.mrb[0].mxu0
    %v1199 = vadd.f32 %v1131, %v1198
    %v1200 = vpop.f32.mrb[0].mxu0
    %1201 = vmatprep.mubr.f32.mxu0 0.0
    %1202 = vmatmul.mubr.f32.gmra.mrb[0].mxu0 %v1046
    %v1203 = vpop.f32.mrb[0].mxu0
    %v1204 = vadd.f32 %v1131, %v1203
    %v1205 = vpop.f32.mrb[0].mxu0
    %1206 = vdwg.mxu0
    %v1207 = vld [vmem:[%s2 + $0xc0] sm:$0xff]
    %v1208 = vld [vmem:[%s2 + $0xc8] sm:$0xff]
    %v1209 = vld [vmem:[%s2 + $0xd0] sm:$0xff]
    %v1210 = vld [vmem:[%s2 + $0xd8] sm:$0xff]
    %v1211 = vld [vmem:[%s2 + $0x1ce] sm:$0x1]
    %v1212 = vlaneseq
    %v1213 = vshrl.u32 %v1212, 7
    %v1214 = vsub.s32 0, %v1213
    %v1215 = vrot.slane %v1211, %v1214
    %1216 = vmatprep.subr.mxu0 0.0
    %1217 = vmatpush1.msra.mxu0 %v1207
    %1218 = vmatprep.subr.mxu0 0.0
    %1219 = vmatpush1.msra.mxu0 %v1208
    %1220 = vmatprep.subr.mxu0 0.0
    %1221 = vmatpush1.msra.mxu0 %v1209
    %1222 = vmatprep.subr.mxu0 0.0
    %1223 = vmatpush1.msra.mxu0 %v1210
    %1224 = vmatprep.subr.mxu0 0.0
    %1225 = vmatpush1.msra.mxu0 0.0
    %1226 = vmatprep.subr.mxu0 0.0
    %1227 = vmatpush1.msra.mxu0 0.0
    %1228 = vmatprep.subr.mxu0 0.0
    %1229 = vmatpush1.msra.mxu0 0.0
    %1230 = vmatprep.subr.mxu0 0.0
    %1231 = vmatpush1.msra.mxu0 0.0
    %1232 = vmatprep.subr.mxu0 0.0
    %1233 = vmatpush1.msra.mxu0 0.0
    %1234 = vmatprep.subr.mxu0 0.0
    %1235 = vmatpush1.msra.mxu0 0.0
    %1236 = vmatprep.subr.mxu0 0.0
    %1237 = vmatpush1.msra.mxu0 0.0
    %1238 = vmatprep.subr.mxu0 0.0
    %1239 = vmatpush1.msra.mxu0 0.0
    %1240 = vmatprep.subr.mxu0 0.0
    %1241 = vmatpush1.msra.mxu0 0.0
    %1242 = vmatprep.subr.mxu0 0.0
    %1243 = vmatpush1.msra.mxu0 0.0
    %1244 = vmatprep.subr.mxu0 0.0
    %1245 = vmatpush1.msra.mxu0 0.0
    %1246 = vmatprep.subr.mxu0 0.0
    %1247 = vmatpush1.msra.mxu0 0.0
    %1248 = vmatprep.subr.mxu0 0.0
    %1249 = vmatpush1.msra.mxu0 0.0
    %1250 = vmatprep.subr.mxu0 0.0
    %1251 = vmatpush1.msra.mxu0 0.0
    %1252 = vmatprep.subr.mxu0 0.0
    %1253 = vmatpush1.msra.mxu0 0.0
    %1254 = vmatprep.subr.mxu0 0.0
    %1255 = vmatpush1.msra.mxu0 0.0
    %1256 = vmatprep.subr.mxu0 0.0
    %1257 = vmatpush1.msra.mxu0 0.0
    %1258 = vmatprep.subr.mxu0 0.0
    %1259 = vmatpush1.msra.mxu0 0.0
    %1260 = vmatprep.subr.mxu0 0.0
    %1261 = vmatpush1.msra.mxu0 0.0
    %1262 = vmatprep.subr.mxu0 0.0
    %1263 = vmatpush1.msra.mxu0 0.0
    %1264 = vmatprep.subr.mxu0 0.0
    %1265 = vmatpush1.msra.mxu0 0.0
    %1266 = vmatprep.subr.mxu0 0.0
    %1267 = vmatpush1.msra.mxu0 0.0
    %1268 = vmatprep.subr.mxu0 0.0
    %1269 = vmatpush1.msra.mxu0 0.0
    %1270 = vmatprep.subr.mxu0 0.0
    %1271 = vmatpush1.msra.mxu0 0.0
    %1272 = vmatprep.subr.mxu0 0.0
    %1273 = vmatpush1.msra.mxu0 0.0
    %1274 = vmatprep.subr.mxu0 0.0
    %1275 = vmatpush1.msra.mxu0 0.0
    %1276 = vmatprep.subr.mxu0 0.0
    %1277 = vmatpush1.msra.mxu0 0.0
    %1278 = vmatprep.subr.mxu0 0.0
    %1279 = vmatpush1.msra.mxu0 0.0
    %1280 = vmatprep.mubr.f32.mxu0 0.0
    %1281 = vmatmul.mubr.f32.gmra.mrb[0].mxu0 %v1043
    %v1282 = vpop.f32.mrb[0].mxu0
    %v1283 = vadd.f32 %v1215, %v1282
    %v1284 = vpop.f32.mrb[0].mxu0
    %1285 = vmatprep.mubr.f32.mxu0 0.0
    %1286 = vmatmul.mubr.f32.gmra.mrb[0].mxu0 %v1046
    %v1287 = vpop.f32.mrb[0].mxu0
    %v1288 = vadd.f32 %v1215, %v1287
    %v1289 = vpop.f32.mrb[0].mxu0
    %1290 = vdwg.mxu0
    %v1291 = vmul.f32 %v1199, %v17
    %v1292 = vmul.f32 %v1199, %v18
    %v1293 = vmul.f32 %v1199, %v19
    %v1294 = vmul.f32 %v1199, %v20
    %v1295 = vmul.f32 %v1283, %v17
    %v1296 = vmul.f32 %v1283, %v18
    %v1297 = vmul.f32 %v1283, %v19
    %v1298 = vmul.f32 %v1283, %v20
    %v1300 = vsel %vm217, %v1115, 0
    %v1303 = vsel %vm217, %v1291, 0
    %v1306 = vsel %vm217, %v1292, 0
    %v1309 = vsel %vm217, %v1293, 0
    %v1312 = vsel %vm217, %v1294, 0
    %1314 = vmatprep.subr.mxu0 0.0
    %1315 = vmatpush1.xpose.msra.mxu0 %v1303
    %1316 = vmatprep.subr.mxu0 0.0
    %1317 = vmatpush1.xpose.msra.mxu0 %v1306
    %1318 = vmatprep.subr.mxu0 0.0
    %1319 = vmatpush1.xpose.msra.mxu0 %v1309
    %1320 = vmatprep.subr.mxu0 0.0
    %1321 = vmatpush1.xpose.msra.mxu0 %v1312
    %1322 = vmatprep.subr.mxu0 0.0
    %1323 = vmatpush1.xpose.msra.mxu0 0.0
    %1324 = vmatprep.subr.mxu0 0.0
    %1325 = vmatpush1.xpose.msra.mxu0 0.0
    %1326 = vmatprep.subr.mxu0 0.0
    %1327 = vmatpush1.xpose.msra.mxu0 0.0
    %1328 = vmatprep.subr.mxu0 0.0
    %1329 = vmatpush1.xpose.msra.mxu0 0.0
    %1330 = vmatprep.subr.mxu0 0.0
    %1331 = vmatpush1.xpose.msra.mxu0 0.0
    %1332 = vmatprep.subr.mxu0 0.0
    %1333 = vmatpush1.xpose.msra.mxu0 0.0
    %1334 = vmatprep.subr.mxu0 0.0
    %1335 = vmatpush1.xpose.msra.mxu0 0.0
    %1336 = vmatprep.subr.mxu0 0.0
    %1337 = vmatpush1.xpose.msra.mxu0 0.0
    %1338 = vmatprep.subr.mxu0 0.0
    %1339 = vmatpush1.xpose.msra.mxu0 0.0
    %1340 = vmatprep.subr.mxu0 0.0
    %1341 = vmatpush1.xpose.msra.mxu0 0.0
    %1342 = vmatprep.subr.mxu0 0.0
    %1343 = vmatpush1.xpose.msra.mxu0 0.0
    %1344 = vmatprep.subr.mxu0 0.0
    %1345 = vmatpush1.xpose.msra.mxu0 0.0
    %1346 = vmatprep.subr.mxu0 0.0
    %1347 = vmatpush1.xpose.msra.mxu0 0.0
    %1348 = vmatprep.subr.mxu0 0.0
    %1349 = vmatpush1.xpose.msra.mxu0 0.0
    %1350 = vmatprep.subr.mxu0 0.0
    %1351 = vmatpush1.xpose.msra.mxu0 0.0
    %1352 = vmatprep.subr.mxu0 0.0
    %1353 = vmatpush1.xpose.msra.mxu0 0.0
    %1354 = vmatprep.subr.mxu0 0.0
    %1355 = vmatpush1.xpose.msra.mxu0 0.0
    %1356 = vmatprep.subr.mxu0 0.0
    %1357 = vmatpush1.xpose.msra.mxu0 0.0
    %1358 = vmatprep.subr.mxu0 0.0
    %1359 = vmatpush1.xpose.msra.mxu0 0.0
    %1360 = vmatprep.subr.mxu0 0.0
    %1361 = vmatpush1.xpose.msra.mxu0 0.0
    %1362 = vmatprep.subr.mxu0 0.0
    %1363 = vmatpush1.xpose.msra.mxu0 0.0
    %1364 = vmatprep.subr.mxu0 0.0
    %1365 = vmatpush1.xpose.msra.mxu0 0.0
    %1366 = vmatprep.subr.mxu0 0.0
    %1367 = vmatpush1.xpose.msra.mxu0 0.0
    %1368 = vmatprep.subr.mxu0 0.0
    %1369 = vmatpush1.xpose.msra.mxu0 0.0
    %1370 = vmatprep.subr.mxu0 0.0
    %1371 = vmatpush1.xpose.msra.mxu0 0.0
    %1372 = vmatprep.subr.mxu0 0.0
    %1373 = vmatpush1.xpose.msra.mxu0 0.0
    %1374 = vmatprep.subr.mxu0 0.0
    %1375 = vmatpush1.xpose.msra.mxu0 0.0
    %1376 = vmatprep.subr.mxu0 0.0
    %1377 = vmatpush1.xpose.msra.mxu0 0.0
    %1378 = vmatprep.mubr.f32.mxu0 0.0
    %1379 = vmatmul.mubr.f32.gmra.mrb[0].mxu0 %v1300
    %v1380 = vpop.f32.mrb[0].mxu0
    %v1381 = vadd.f32 0.0, %v1380
    %v1382 = vpop.f32.mrb[0].mxu0
    %1383 = vdwg.mxu0
    %v1384 = vmul.f32 %v1204, %v17
    %v1385 = vmul.f32 %v1204, %v18
    %v1386 = vmul.f32 %v1204, %v19
    %v1387 = vmul.f32 %v1204, %v20
    %v1388 = vmul.f32 %v1288, %v17
    %v1389 = vmul.f32 %v1288, %v18
    %v1390 = vmul.f32 %v1288, %v19
    %v1391 = vmul.f32 %v1288, %v20
    %v1393 = vsel %vm217, %v1120, 0
    %v1396 = vsel %vm217, %v1384, 0
    %v1399 = vsel %vm217, %v1385, 0
    %v1402 = vsel %vm217, %v1386, 0
    %v1405 = vsel %vm217, %v1387, 0
    %1407 = vmatprep.subr.mxu0 0.0
    %1408 = vmatpush1.xpose.msra.mxu0 %v1396
    %1409 = vmatprep.subr.mxu0 0.0
    %1410 = vmatpush1.xpose.msra.mxu0 %v1399
    %1411 = vmatprep.subr.mxu0 0.0
    %1412 = vmatpush1.xpose.msra.mxu0 %v1402
    %1413 = vmatprep.subr.mxu0 0.0
    %1414 = vmatpush1.xpose.msra.mxu0 %v1405
    %1415 = vmatprep.subr.mxu0 0.0
    %1416 = vmatpush1.xpose.msra.mxu0 0.0
    %1417 = vmatprep.subr.mxu0 0.0
    %1418 = vmatpush1.xpose.msra.mxu0 0.0
    %1419 = vmatprep.subr.mxu0 0.0
    %1420 = vmatpush1.xpose.msra.mxu0 0.0
    %1421 = vmatprep.subr.mxu0 0.0
    %1422 = vmatpush1.xpose.msra.mxu0 0.0
    %1423 = vmatprep.subr.mxu0 0.0
    %1424 = vmatpush1.xpose.msra.mxu0 0.0
    %1425 = vmatprep.subr.mxu0 0.0
    %1426 = vmatpush1.xpose.msra.mxu0 0.0
    %1427 = vmatprep.subr.mxu0 0.0
    %1428 = vmatpush1.xpose.msra.mxu0 0.0
    %1429 = vmatprep.subr.mxu0 0.0
    %1430 = vmatpush1.xpose.msra.mxu0 0.0
    %1431 = vmatprep.subr.mxu0 0.0
    %1432 = vmatpush1.xpose.msra.mxu0 0.0
    %1433 = vmatprep.subr.mxu0 0.0
    %1434 = vmatpush1.xpose.msra.mxu0 0.0
    %1435 = vmatprep.subr.mxu0 0.0
    %1436 = vmatpush1.xpose.msra.mxu0 0.0
    %1437 = vmatprep.subr.mxu0 0.0
    %1438 = vmatpush1.xpose.msra.mxu0 0.0
    %1439 = vmatprep.subr.mxu0 0.0
    %1440 = vmatpush1.xpose.msra.mxu0 0.0
    %1441 = vmatprep.subr.mxu0 0.0
    %1442 = vmatpush1.xpose.msra.mxu0 0.0
    %1443 = vmatprep.subr.mxu0 0.0
    %1444 = vmatpush1.xpose.msra.mxu0 0.0
    %1445 = vmatprep.subr.mxu0 0.0
    %1446 = vmatpush1.xpose.msra.mxu0 0.0
    %1447 = vmatprep.subr.mxu0 0.0
    %1448 = vmatpush1.xpose.msra.mxu0 0.0
    %1449 = vmatprep.subr.mxu0 0.0
    %1450 = vmatpush1.xpose.msra.mxu0 0.0
    %1451 = vmatprep.subr.mxu0 0.0
    %1452 = vmatpush1.xpose.msra.mxu0 0.0
    %1453 = vmatprep.subr.mxu0 0.0
    %1454 = vmatpush1.xpose.msra.mxu0 0.0
    %1455 = vmatprep.subr.mxu0 0.0
    %1456 = vmatpush1.xpose.msra.mxu0 0.0
    %1457 = vmatprep.subr.mxu0 0.0
    %1458 = vmatpush1.xpose.msra.mxu0 0.0
    %1459 = vmatprep.subr.mxu0 0.0
    %1460 = vmatpush1.xpose.msra.mxu0 0.0
    %1461 = vmatprep.subr.mxu0 0.0
    %1462 = vmatpush1.xpose.msra.mxu0 0.0
    %1463 = vmatprep.subr.mxu0 0.0
    %1464 = vmatpush1.xpose.msra.mxu0 0.0
    %1465 = vmatprep.subr.mxu0 0.0
    %1466 = vmatpush1.xpose.msra.mxu0 0.0
    %1467 = vmatprep.subr.mxu0 0.0
    %1468 = vmatpush1.xpose.msra.mxu0 0.0
    %1469 = vmatprep.subr.mxu0 0.0
    %1470 = vmatpush1.xpose.msra.mxu0 0.0
    %1471 = vmatprep.mubr.f32.mxu0 0.0
    %1472 = vmatmul.mubr.f32.gmra.mrb[0].mxu0 %v1393
    %v1473 = vpop.f32.mrb[0].mxu0
    %v1474 = vadd.f32 0.0, %v1473
    %v1475 = vpop.f32.mrb[0].mxu0
    %1476 = vdwg.mxu0
    %v1477 = vmul.f32 %v1381, 0.35355338
    %v1478 = vmul.f32 %v1474, 0.35355338
    %v1479 = vsel %vm217, %v1477, -inf
    %1480 = vmax.xlane.f32.xlu0 %v1479
    %v1481 = vpop.xlane.xlu0 %1480
    %v1482 = vsel %vm217, %v1478, -inf
    %1483 = vmax.xlane.f32.xlu0 %v1482
    %v1484 = vpop.xlane.xlu0 %1483
    %v1485 = vsub.f32 %v1477, %v1481
    %v1486 = vsub.f32 %v1478, %v1484
    %v1487 = vmul.f32 %v1485, 1.442695
    %v1488 = vpow.pop %v1487
    %v1489 = vmul.f32 %v1486, 1.442695
    %v1490 = vpow.pop %v1489
    %v1492 = vsel %vm217, %v1488, 0
    %v1495 = vsel %vm217, %v1490, 0
    %1497 = vmatprep.subr.mxu0 0.0
    %1498 = vmatpush1.msra.mxu0 %v17
    %1499 = vmatprep.subr.mxu0 0.0
    %1500 = vmatpush1.msra.mxu0 %v18
    %1501 = vmatprep.subr.mxu0 0.0
    %1502 = vmatpush1.msra.mxu0 %v19
    %1503 = vmatprep.subr.mxu0 0.0
    %1504 = vmatpush1.msra.mxu0 %v20
    %1505 = vmatprep.subr.mxu0 0.0
    %1506 = vmatpush1.msra.mxu0 0.0
    %1507 = vmatprep.subr.mxu0 0.0
    %1508 = vmatpush1.msra.mxu0 0.0
    %1509 = vmatprep.subr.mxu0 0.0
    %1510 = vmatpush1.msra.mxu0 0.0
    %1511 = vmatprep.subr.mxu0 0.0
    %1512 = vmatpush1.msra.mxu0 0.0
    %1513 = vmatprep.subr.mxu0 0.0
    %1514 = vmatpush1.msra.mxu0 0.0
    %1515 = vmatprep.subr.mxu0 0.0
    %1516 = vmatpush1.msra.mxu0 0.0
    %1517 = vmatprep.subr.mxu0 0.0
    %1518 = vmatpush1.msra.mxu0 0.0
    %1519 = vmatprep.subr.mxu0 0.0
    %1520 = vmatpush1.msra.mxu0 0.0
    %1521 = vmatprep.subr.mxu0 0.0
    %1522 = vmatpush1.msra.mxu0 0.0
    %1523 = vmatprep.subr.mxu0 0.0
    %1524 = vmatpush1.msra.mxu0 0.0
    %1525 = vmatprep.subr.mxu0 0.0
    %1526 = vmatpush1.msra.mxu0 0.0
    %1527 = vmatprep.subr.mxu0 0.0
    %1528 = vmatpush1.msra.mxu0 0.0
    %1529 = vmatprep.subr.mxu0 0.0
    %1530 = vmatpush1.msra.mxu0 0.0
    %1531 = vmatprep.subr.mxu0 0.0
    %1532 = vmatpush1.msra.mxu0 0.0
    %1533 = vmatprep.subr.mxu0 0.0
    %1534 = vmatpush1.msra.mxu0 0.0
    %1535 = vmatprep.subr.mxu0 0.0
    %1536 = vmatpush1.msra.mxu0 0.0
    %1537 = vmatprep.subr.mxu0 0.0
    %1538 = vmatpush1.msra.mxu0 0.0
    %1539 = vmatprep.subr.mxu0 0.0
    %1540 = vmatpush1.msra.mxu0 0.0
    %1541 = vmatprep.subr.mxu0 0.0
    %1542 = vmatpush1.msra.mxu0 0.0
    %1543 = vmatprep.subr.mxu0 0.0
    %1544 = vmatpush1.msra.mxu0 0.0
    %1545 = vmatprep.subr.mxu0 0.0
    %1546 = vmatpush1.msra.mxu0 0.0
    %1547 = vmatprep.subr.mxu0 0.0
    %1548 = vmatpush1.msra.mxu0 0.0
    %1549 = vmatprep.subr.mxu0 0.0
    %1550 = vmatpush1.msra.mxu0 0.0
    %1551 = vmatprep.subr.mxu0 0.0
    %1552 = vmatpush1.msra.mxu0 0.0
    %1553 = vmatprep.subr.mxu0 0.0
    %1554 = vmatpush1.msra.mxu0 0.0
    %1555 = vmatprep.subr.mxu0 0.0
    %1556 = vmatpush1.msra.mxu0 0.0
    %1557 = vmatprep.subr.mxu0 0.0
    %1558 = vmatpush1.msra.mxu0 0.0
    %1559 = vmatprep.subr.mxu0 0.0
    %1560 = vmatpush1.msra.mxu0 0.0
    %1561 = vmatprep.mubr.f32.mxu0 0.0
    %1562 = vmatmul.mubr.f32.gmra.mrb[0].mxu0 %v1492
    %v1563 = vpop.f32.mrb[0].mxu0
    %v1564 = vadd.f32 0.0, %v1563
    %v1565 = vpop.f32.mrb[0].mxu0
    %1566 = vmatprep.mubr.f32.mxu0 0.0
    %1567 = vmatmul.mubr.f32.gmra.mrb[0].mxu0 %v1495
    %v1568 = vpop.f32.mrb[0].mxu0
    %v1569 = vadd.f32 0.0, %v1568
    %v1570 = vpop.f32.mrb[0].mxu0
    %1571 = vdwg.mxu0
    %v1572 = vrcp.pop %v1564
    %v1573 = vrcp.pop %v1569
    %v1574 = vmul.f32 %v1488, %v1572
    %v1575 = vmul.f32 %v1490, %v1573
    %v1577 = vsel %vm217, %v1574, 0
    %1579 = vmatprep.subr.mxu0 0.0
    %1580 = vmatpush1.msra.mxu0 %v1295
    %1581 = vmatprep.subr.mxu0 0.0
    %1582 = vmatpush1.msra.mxu0 %v1296
    %1583 = vmatprep.subr.mxu0 0.0
    %1584 = vmatpush1.msra.mxu0 %v1297
    %1585 = vmatprep.subr.mxu0 0.0
    %1586 = vmatpush1.msra.mxu0 %v1298
    %1587 = vmatprep.subr.mxu0 0.0
    %1588 = vmatpush1.msra.mxu0 0.0
    %1589 = vmatprep.subr.mxu0 0.0
    %1590 = vmatpush1.msra.mxu0 0.0
    %1591 = vmatprep.subr.mxu0 0.0
    %1592 = vmatpush1.msra.mxu0 0.0
    %1593 = vmatprep.subr.mxu0 0.0
    %1594 = vmatpush1.msra.mxu0 0.0
    %1595 = vmatprep.subr.mxu0 0.0
    %1596 = vmatpush1.msra.mxu0 0.0
    %1597 = vmatprep.subr.mxu0 0.0
    %1598 = vmatpush1.msra.mxu0 0.0
    %1599 = vmatprep.subr.mxu0 0.0
    %1600 = vmatpush1.msra.mxu0 0.0
    %1601 = vmatprep.subr.mxu0 0.0
    %1602 = vmatpush1.msra.mxu0 0.0
    %1603 = vmatprep.subr.mxu0 0.0
    %1604 = vmatpush1.msra.mxu0 0.0
    %1605 = vmatprep.subr.mxu0 0.0
    %1606 = vmatpush1.msra.mxu0 0.0
    %1607 = vmatprep.subr.mxu0 0.0
    %1608 = vmatpush1.msra.mxu0 0.0
    %1609 = vmatprep.subr.mxu0 0.0
    %1610 = vmatpush1.msra.mxu0 0.0
    %1611 = vmatprep.subr.mxu0 0.0
    %1612 = vmatpush1.msra.mxu0 0.0
    %1613 = vmatprep.subr.mxu0 0.0
    %1614 = vmatpush1.msra.mxu0 0.0
    %1615 = vmatprep.subr.mxu0 0.0
    %1616 = vmatpush1.msra.mxu0 0.0
    %1617 = vmatprep.subr.mxu0 0.0
    %1618 = vmatpush1.msra.mxu0 0.0
    %1619 = vmatprep.subr.mxu0 0.0
    %1620 = vmatpush1.msra.mxu0 0.0
    %1621 = vmatprep.subr.mxu0 0.0
    %1622 = vmatpush1.msra.mxu0 0.0
    %1623 = vmatprep.subr.mxu0 0.0
    %1624 = vmatpush1.msra.mxu0 0.0
    %1625 = vmatprep.subr.mxu0 0.0
    %1626 = vmatpush1.msra.mxu0 0.0
    %1627 = vmatprep.subr.mxu0 0.0
    %1628 = vmatpush1.msra.mxu0 0.0
    %1629 = vmatprep.subr.mxu0 0.0
    %1630 = vmatpush1.msra.mxu0 0.0
    %1631 = vmatprep.subr.mxu0 0.0
    %1632 = vmatpush1.msra.mxu0 0.0
    %1633 = vmatprep.subr.mxu0 0.0
    %1634 = vmatpush1.msra.mxu0 0.0
    %1635 = vmatprep.subr.mxu0 0.0
    %1636 = vmatpush1.msra.mxu0 0.0
    %1637 = vmatprep.subr.mxu0 0.0
    %1638 = vmatpush1.msra.mxu0 0.0
    %1639 = vmatprep.subr.mxu0 0.0
    %1640 = vmatpush1.msra.mxu0 0.0
    %1641 = vmatprep.subr.mxu0 0.0
    %1642 = vmatpush1.msra.mxu0 0.0
    %1643 = vmatprep.mubr.f32.mxu0 0.0
    %1644 = vmatmul.mubr.f32.gmra.mrb[0].mxu0 %v1577
    %v1645 = vpop.f32.mrb[0].mxu0
    %v1646 = vadd.f32 0.0, %v1645
    %v1647 = vpop.f32.mrb[0].mxu0
    %1648 = vdwg.mxu0
    %v1650 = vsel %vm217, %v1575, 0
    %1652 = vmatprep.subr.mxu0 0.0
    %1653 = vmatpush1.msra.mxu0 %v1388
    %1654 = vmatprep.subr.mxu0 0.0
    %1655 = vmatpush1.msra.mxu0 %v1389
    %1656 = vmatprep.subr.mxu0 0.0
    %1657 = vmatpush1.msra.mxu0 %v1390
    %1658 = vmatprep.subr.mxu0 0.0
    %1659 = vmatpush1.msra.mxu0 %v1391
    %1660 = vmatprep.subr.mxu0 0.0
    %1661 = vmatpush1.msra.mxu0 0.0
    %1662 = vmatprep.subr.mxu0 0.0
    %1663 = vmatpush1.msra.mxu0 0.0
    %1664 = vmatprep.subr.mxu0 0.0
    %1665 = vmatpush1.msra.mxu0 0.0
    %1666 = vmatprep.subr.mxu0 0.0
    %1667 = vmatpush1.msra.mxu0 0.0
    %1668 = vmatprep.subr.mxu0 0.0
    %1669 = vmatpush1.msra.mxu0 0.0
    %1670 = vmatprep.subr.mxu0 0.0
    %1671 = vmatpush1.msra.mxu0 0.0
    %1672 = vmatprep.subr.mxu0 0.0
    %1673 = vmatpush1.msra.mxu0 0.0
    %1674 = vmatprep.subr.mxu0 0.0
    %1675 = vmatpush1.msra.mxu0 0.0
    %1676 = vmatprep.subr.mxu0 0.0
    %1677 = vmatpush1.msra.mxu0 0.0
    %1678 = vmatprep.subr.mxu0 0.0
    %1679 = vmatpush1.msra.mxu0 0.0
    %1680 = vmatprep.subr.mxu0 0.0
    %1681 = vmatpush1.msra.mxu0 0.0
    %1682 = vmatprep.subr.mxu0 0.0
    %1683 = vmatpush1.msra.mxu0 0.0
    %1684 = vmatprep.subr.mxu0 0.0
    %1685 = vmatpush1.msra.mxu0 0.0
    %1686 = vmatprep.subr.mxu0 0.0
    %1687 = vmatpush1.msra.mxu0 0.0
    %1688 = vmatprep.subr.mxu0 0.0
    %1689 = vmatpush1.msra.mxu0 0.0
    %1690 = vmatprep.subr.mxu0 0.0
    %1691 = vmatpush1.msra.mxu0 0.0
    %1692 = vmatprep.subr.mxu0 0.0
    %1693 = vmatpush1.msra.mxu0 0.0
    %1694 = vmatprep.subr.mxu0 0.0
    %1695 = vmatpush1.msra.mxu0 0.0
    %1696 = vmatprep.subr.mxu0 0.0
    %1697 = vmatpush1.msra.mxu0 0.0
    %1698 = vmatprep.subr.mxu0 0.0
    %1699 = vmatpush1.msra.mxu0 0.0
    %1700 = vmatprep.subr.mxu0 0.0
    %1701 = vmatpush1.msra.mxu0 0.0
    %1702 = vmatprep.subr.mxu0 0.0
    %1703 = vmatpush1.msra.mxu0 0.0
    %1704 = vmatprep.subr.mxu0 0.0
    %1705 = vmatpush1.msra.mxu0 0.0
    %1706 = vmatprep.subr.mxu0 0.0
    %1707 = vmatpush1.msra.mxu0 0.0
    %1708 = vmatprep.subr.mxu0 0.0
    %1709 = vmatpush1.msra.mxu0 0.0
    %1710 = vmatprep.subr.mxu0 0.0
    %1711 = vmatpush1.msra.mxu0 0.0
    %1712 = vmatprep.subr.mxu0 0.0
    %1713 = vmatpush1.msra.mxu0 0.0
    %1714 = vmatprep.subr.mxu0 0.0
    %1715 = vmatpush1.msra.mxu0 0.0
    %1716 = vmatprep.mubr.f32.mxu0 0.0
    %1717 = vmatmul.mubr.f32.gmra.mrb[0].mxu0 %v1650
    %v1718 = vpop.f32.mrb[0].mxu0
    %v1719 = vadd.f32 0.0, %v1718
    %v1720 = vpop.f32.mrb[0].mxu0
    %1721 = vdwg.mxu0
    %v1722 = vld [vmem:[%s2 + $0xe0] sm:$0xff]
    %v1723 = vld [vmem:[%s2 + $0xe8] sm:$0xff]
    %v1724 = vld [vmem:[%s2 + $0xf0] sm:$0xff]
    %v1725 = vld [vmem:[%s2 + $0xf8] sm:$0xff]
    %v1726 = vld [vmem:[%s2 + $0x1cf] sm:$0x1]
    %v1727 = vlaneseq
    %v1728 = vshrl.u32 %v1727, 7
    %v1729 = vsub.s32 0, %v1728
    %v1730 = vrot.slane %v1726, %v1729
    %v1732 = vsel %vm217, %v1646, 0
    %v1735 = vsel %vm217, %v1719, 0
    %1737 = vmatprep.subr.mxu0 0.0
    %1738 = vmatpush1.msra.mxu0 %v1722
    %1739 = vmatprep.subr.mxu0 0.0
    %1740 = vmatpush1.msra.mxu0 %v1723
    %1741 = vmatprep.subr.mxu0 0.0
    %1742 = vmatpush1.msra.mxu0 %v1724
    %1743 = vmatprep.subr.mxu0 0.0
    %1744 = vmatpush1.msra.mxu0 %v1725
    %1745 = vmatprep.subr.mxu0 0.0
    %1746 = vmatpush1.msra.mxu0 0.0
    %1747 = vmatprep.subr.mxu0 0.0
    %1748 = vmatpush1.msra.mxu0 0.0
    %1749 = vmatprep.subr.mxu0 0.0
    %1750 = vmatpush1.msra.mxu0 0.0
    %1751 = vmatprep.subr.mxu0 0.0
    %1752 = vmatpush1.msra.mxu0 0.0
    %1753 = vmatprep.subr.mxu0 0.0
    %1754 = vmatpush1.msra.mxu0 0.0
    %1755 = vmatprep.subr.mxu0 0.0
    %1756 = vmatpush1.msra.mxu0 0.0
    %1757 = vmatprep.subr.mxu0 0.0
    %1758 = vmatpush1.msra.mxu0 0.0
    %1759 = vmatprep.subr.mxu0 0.0
    %1760 = vmatpush1.msra.mxu0 0.0
    %1761 = vmatprep.subr.mxu0 0.0
    %1762 = vmatpush1.msra.mxu0 0.0
    %1763 = vmatprep.subr.mxu0 0.0
    %1764 = vmatpush1.msra.mxu0 0.0
    %1765 = vmatprep.subr.mxu0 0.0
    %1766 = vmatpush1.msra.mxu0 0.0
    %1767 = vmatprep.subr.mxu0 0.0
    %1768 = vmatpush1.msra.mxu0 0.0
    %1769 = vmatprep.subr.mxu0 0.0
    %1770 = vmatpush1.msra.mxu0 0.0
    %1771 = vmatprep.subr.mxu0 0.0
    %1772 = vmatpush1.msra.mxu0 0.0
    %1773 = vmatprep.subr.mxu0 0.0
    %1774 = vmatpush1.msra.mxu0 0.0
    %1775 = vmatprep.subr.mxu0 0.0
    %1776 = vmatpush1.msra.mxu0 0.0
    %1777 = vmatprep.subr.mxu0 0.0
    %1778 = vmatpush1.msra.mxu0 0.0
    %1779 = vmatprep.subr.mxu0 0.0
    %1780 = vmatpush1.msra.mxu0 0.0
    %1781 = vmatprep.subr.mxu0 0.0
    %1782 = vmatpush1.msra.mxu0 0.0
    %1783 = vmatprep.subr.mxu0 0.0
    %1784 = vmatpush1.msra.mxu0 0.0
    %1785 = vmatprep.subr.mxu0 0.0
    %1786 = vmatpush1.msra.mxu0 0.0
    %1787 = vmatprep.subr.mxu0 0.0
    %1788 = vmatpush1.msra.mxu0 0.0
    %1789 = vmatprep.subr.mxu0 0.0
    %1790 = vmatpush1.msra.mxu0 0.0
    %1791 = vmatprep.subr.mxu0 0.0
    %1792 = vmatpush1.msra.mxu0 0.0
    %1793 = vmatprep.subr.mxu0 0.0
    %1794 = vmatpush1.msra.mxu0 0.0
    %1795 = vmatprep.subr.mxu0 0.0
    %1796 = vmatpush1.msra.mxu0 0.0
    %1797 = vmatprep.subr.mxu0 0.0
    %1798 = vmatpush1.msra.mxu0 0.0
    %1799 = vmatprep.subr.mxu0 0.0
    %1800 = vmatpush1.msra.mxu0 0.0
    %1801 = vmatprep.mubr.f32.mxu0 0.0
    %1802 = vmatmul.mubr.f32.gmra.mrb[0].mxu0 %v1732
    %v1803 = vpop.f32.mrb[0].mxu0
    %v1804 = vadd.f32 %v1730, %v1803
    %v1805 = vpop.f32.mrb[0].mxu0
    %1806 = vmatprep.mubr.f32.mxu0 0.0
    %1807 = vmatmul.mubr.f32.gmra.mrb[0].mxu0 %v1735
    %v1808 = vpop.f32.mrb[0].mxu0
    %v1809 = vadd.f32 %v1730, %v1808
    %v1810 = vpop.f32.mrb[0].mxu0
    %1811 = vdwg.mxu0
    %v1812 = vadd.f32 %v1031, %v1804
    %v1813 = vadd.f32 %v1032, %v1809
    %v1814 = vsel %vm217, %v1812, 0.0
    %1815 = vadd.xlane.f32.xlu0 %v1814
    %v1816 = vpop.xlane.xlu0 %1815
    %v1817 = vsel %vm217, %v1813, 0.0
    %1818 = vadd.xlane.f32.xlu0 %v1817
    %v1819 = vpop.xlane.xlu0 %1818
    %v1820 = vmul.f32 %v1816, %v998
    %v1821 = vmul.f32 %v1819, %v998
    %v1822 = vsub.f32 %v1812, %v1820
    %v1823 = vsub.f32 %v1813, %v1821
    %v1824 = vmul.f32 %v1822, %v1822
    %v1825 = vmul.f32 %v1823, %v1823
    %v1826 = vsel %vm217, %v1824, 0.0
    %1827 = vadd.xlane.f32.xlu0 %v1826
    %v1828 = vpop.xlane.xlu0 %1827
    %v1829 = vsel %vm217, %v1825, 0.0
    %1830 = vadd.xlane.f32.xlu0 %v1829
    %v1831 = vpop.xlane.xlu0 %1830
    %v1832 = vmul.f32 %v1828, %v998
    %v1833 = vmul.f32 %v1831, %v998
    %v1834 = vadd.f32 %v1832, 1e-05
    %v1835 = vadd.f32 %v1833, 1e-05
    %v1836 = vrsqrt.pop %v1834
    %v1837 = vrsqrt.pop %v1835
    %v1838 = vmul.f32 %v1822, %v1836
    %v1839 = vmul.f32 %v1823, %v1837
    %v1840 = vld [vmem:[%s2 + $0x1d6] sm:$0x1]
    %v1841 = vlaneseq
    %v1842 = vshrl.u32 %v1841, 7
    %v1843 = vsub.s32 0, %v1842
    %v1844 = vrot.slane %v1840, %v1843
    %v1845 = vmul.f32 %v1838, %v1844
    %v1846 = vmul.f32 %v1839, %v1844
    %v1847 = vld [vmem:[%s2 + $0x1d7] sm:$0x1]
    %v1848 = vlaneseq
    %v1849 = vshrl.u32 %v1848, 7
    %v1850 = vsub.s32 0, %v1849
    %v1851 = vrot.slane %v1847, %v1850
    %v1852 = vadd.f32 %v1845, %v1851
    %v1853 = vadd.f32 %v1846, %v1851
    %v1854 = vld [vmem:[%s2 + $0x100] sm:$0xff]
    %v1855 = vld [vmem:[%s2 + $0x108] sm:$0xff]
    %v1856 = vld [vmem:[%s2 + $0x110] sm:$0xff]
    %v1857 = vld [vmem:[%s2 + $0x118] sm:$0xff]
    %v1858 = vld [vmem:[%s2 + $0x1d0] sm:$0x1]
    %v1859 = vlaneseq
    %v1860 = vshrl.u32 %v1859, 7
    %v1861 = vsub.s32 0, %v1860
    %v1862 = vrot.slane %v1858, %v1861
    %v1864 = vsel %vm217, %v1852, 0
    %v1867 = vsel %vm217, %v1853, 0
    %1869 = vmatprep.subr.mxu0 0.0
    %1870 = vmatpush1.msra.mxu0 %v1854
    %1871 = vmatprep.subr.mxu0 0.0
    %1872 = vmatpush1.msra.mxu0 %v1855
    %1873 = vmatprep.subr.mxu0 0.0
    %1874 = vmatpush1.msra.mxu0 %v1856
    %1875 = vmatprep.subr.mxu0 0.0
    %1876 = vmatpush1.msra.mxu0 %v1857
    %1877 = vmatprep.subr.mxu0 0.0
    %1878 = vmatpush1.msra.mxu0 0.0
    %1879 = vmatprep.subr.mxu0 0.0
    %1880 = vmatpush1.msra.mxu0 0.0
    %1881 = vmatprep.subr.mxu0 0.0
    %1882 = vmatpush1.msra.mxu0 0.0
    %1883 = vmatprep.subr.mxu0 0.0
    %1884 = vmatpush1.msra.mxu0 0.0
    %1885 = vmatprep.subr.mxu0 0.0
    %1886 = vmatpush1.msra.mxu0 0.0
    %1887 = vmatprep.subr.mxu0 0.0
    %1888 = vmatpush1.msra.mxu0 0.0
    %1889 = vmatprep.subr.mxu0 0.0
    %1890 = vmatpush1.msra.mxu0 0.0
    %1891 = vmatprep.subr.mxu0 0.0
    %1892 = vmatpush1.msra.mxu0 0.0
    %1893 = vmatprep.subr.mxu0 0.0
    %1894 = vmatpush1.msra.mxu0 0.0
    %1895 = vmatprep.subr.mxu0 0.0
    %1896 = vmatpush1.msra.mxu0 0.0
    %1897 = vmatprep.subr.mxu0 0.0
    %1898 = vmatpush1.msra.mxu0 0.0
    %1899 = vmatprep.subr.mxu0 0.0
    %1900 = vmatpush1.msra.mxu0 0.0
    %1901 = vmatprep.subr.mxu0 0.0
    %1902 = vmatpush1.msra.mxu0 0.0
    %1903 = vmatprep.subr.mxu0 0.0
    %1904 = vmatpush1.msra.mxu0 0.0
    %1905 = vmatprep.subr.mxu0 0.0
    %1906 = vmatpush1.msra.mxu0 0.0
    %1907 = vmatprep.subr.mxu0 0.0
    %1908 = vmatpush1.msra.mxu0 0.0
    %1909 = vmatprep.subr.mxu0 0.0
    %1910 = vmatpush1.msra.mxu0 0.0
    %1911 = vmatprep.subr.mxu0 0.0
    %1912 = vmatpush1.msra.mxu0 0.0
    %1913 = vmatprep.subr.mxu0 0.0
    %1914 = vmatpush1.msra.mxu0 0.0
    %1915 = vmatprep.subr.mxu0 0.0
    %1916 = vmatpush1.msra.mxu0 0.0
    %1917 = vmatprep.subr.mxu0 0.0
    %1918 = vmatpush1.msra.mxu0 0.0
    %1919 = vmatprep.subr.mxu0 0.0
    %1920 = vmatpush1.msra.mxu0 0.0
    %1921 = vmatprep.subr.mxu0 0.0
    %1922 = vmatpush1.msra.mxu0 0.0
    %1923 = vmatprep.subr.mxu0 0.0
    %1924 = vmatpush1.msra.mxu0 0.0
    %1925 = vmatprep.subr.mxu0 0.0
    %1926 = vmatpush1.msra.mxu0 0.0
    %1927 = vmatprep.subr.mxu0 0.0
    %1928 = vmatpush1.msra.mxu0 0.0
    %1929 = vmatprep.subr.mxu0 0.0
    %1930 = vmatpush1.msra.mxu0 0.0
    %1931 = vmatprep.subr.mxu0 0.0
    %1932 = vmatpush1.msra.mxu0 0.0
    %1933 = vmatprep.mubr.f32.mxu0 0.0
    %1934 = vmatmul.mubr.f32.gmra.mrb[0].mxu0 %v1864
    %v1935 = vpop.f32.mrb[0].mxu0
    %v1936 = vadd.f32 %v1862, %v1935
    %v1937 = vpop.f32.mrb[0].mxu0
    %1938 = vmatprep.mubr.f32.mxu0 0.0
    %1939 = vmatmul.mubr.f32.gmra.mrb[0].mxu0 %v1867
    %v1940 = vpop.f32.mrb[0].mxu0
    %v1941 = vadd.f32 %v1862, %v1940
    %v1942 = vpop.f32.mrb[0].mxu0
    %1943 = vdwg.mxu0
    %v1944 = vmax.f32 %v1936, 0.0
    %v1945 = vmax.f32 %v1941, 0.0
    %v1946 = vld [vmem:[%s2 + $0x120] sm:$0xff]
    %v1947 = vld [vmem:[%s2 + $0x128] sm:$0xff]
    %v1948 = vld [vmem:[%s2 + $0x130] sm:$0xff]
    %v1949 = vld [vmem:[%s2 + $0x138] sm:$0xff]
    %v1950 = vld [vmem:[%s2 + $0x140] sm:$0xff]
    %v1951 = vld [vmem:[%s2 + $0x148] sm:$0xff]
    %v1952 = vld [vmem:[%s2 + $0x150] sm:$0xff]
    %v1953 = vld [vmem:[%s2 + $0x158] sm:$0xff]
    %v1954 = vld [vmem:[%s2 + $0x1d1] sm:$0x1]
    %v1955 = vlaneseq
    %v1956 = vshrl.u32 %v1955, 7
    %v1957 = vsub.s32 0, %v1956
    %v1958 = vrot.slane %v1954, %v1957
    %v1960 = vsel %vm126, %v1944, 0
    %v1963 = vsel %vm126, %v1945, 0
    %1965 = vmatprep.subr.mxu0 0.0
    %1966 = vmatpush1.msra.mxu0 %v1946
    %1967 = vmatprep.subr.mxu0 0.0
    %1968 = vmatpush1.msra.mxu0 %v1947
    %1969 = vmatprep.subr.mxu0 0.0
    %1970 = vmatpush1.msra.mxu0 %v1948
    %1971 = vmatprep.subr.mxu0 0.0
    %1972 = vmatpush1.msra.mxu0 %v1949
    %1973 = vmatprep.subr.mxu0 0.0
    %1974 = vmatpush1.msra.mxu0 %v1950
    %1975 = vmatprep.subr.mxu0 0.0
    %1976 = vmatpush1.msra.mxu0 %v1951
    %1977 = vmatprep.subr.mxu0 0.0
    %1978 = vmatpush1.msra.mxu0 %v1952
    %1979 = vmatprep.subr.mxu0 0.0
    %1980 = vmatpush1.msra.mxu0 %v1953
    %1981 = vmatprep.subr.mxu0 0.0
    %1982 = vmatpush1.msra.mxu0 0.0
    %1983 = vmatprep.subr.mxu0 0.0
    %1984 = vmatpush1.msra.mxu0 0.0
    %1985 = vmatprep.subr.mxu0 0.0
    %1986 = vmatpush1.msra.mxu0 0.0
    %1987 = vmatprep.subr.mxu0 0.0
    %1988 = vmatpush1.msra.mxu0 0.0
    %1989 = vmatprep.subr.mxu0 0.0
    %1990 = vmatpush1.msra.mxu0 0.0
    %1991 = vmatprep.subr.mxu0 0.0
    %1992 = vmatpush1.msra.mxu0 0.0
    %1993 = vmatprep.subr.mxu0 0.0
    %1994 = vmatpush1.msra.mxu0 0.0
    %1995 = vmatprep.subr.mxu0 0.0
    %1996 = vmatpush1.msra.mxu0 0.0
    %1997 = vmatprep.subr.mxu0 0.0
    %1998 = vmatpush1.msra.mxu0 0.0
    %1999 = vmatprep.subr.mxu0 0.0
    %2000 = vmatpush1.msra.mxu0 0.0
    %2001 = vmatprep.subr.mxu0 0.0
    %2002 = vmatpush1.msra.mxu0 0.0
    %2003 = vmatprep.subr.mxu0 0.0
    %2004 = vmatpush1.msra.mxu0 0.0
    %2005 = vmatprep.subr.mxu0 0.0
    %2006 = vmatpush1.msra.mxu0 0.0
    %2007 = vmatprep.subr.mxu0 0.0
    %2008 = vmatpush1.msra.mxu0 0.0
    %2009 = vmatprep.subr.mxu0 0.0
    %2010 = vmatpush1.msra.mxu0 0.0
    %2011 = vmatprep.subr.mxu0 0.0
    %2012 = vmatpush1.msra.mxu0 0.0
    %2013 = vmatprep.subr.mxu0 0.0
    %2014 = vmatpush1.msra.mxu0 0.0
    %2015 = vmatprep.subr.mxu0 0.0
    %2016 = vmatpush1.msra.mxu0 0.0
    %2017 = vmatprep.subr.mxu0 0.0
    %2018 = vmatpush1.msra.mxu0 0.0
    %2019 = vmatprep.subr.mxu0 0.0
    %2020 = vmatpush1.msra.mxu0 0.0
    %2021 = vmatprep.subr.mxu0 0.0
    %2022 = vmatpush1.msra.mxu0 0.0
    %2023 = vmatprep.subr.mxu0 0.0
    %2024 = vmatpush1.msra.mxu0 0.0
    %2025 = vmatprep.subr.mxu0 0.0
    %2026 = vmatpush1.msra.mxu0 0.0
    %2027 = vmatprep.subr.mxu0 0.0
    %2028 = vmatpush1.msra.mxu0 0.0
    %2029 = vmatprep.mubr.f32.mxu0 0.0
    %2030 = vmatmul.mubr.f32.gmra.mrb[0].mxu0 %v1960
    %v2031 = vpop.f32.mrb[0].mxu0
    %v2032 = vadd.f32 %v1958, %v2031
    %v2033 = vpop.f32.mrb[0].mxu0
    %2034 = vmatprep.mubr.f32.mxu0 0.0
    %2035 = vmatmul.mubr.f32.gmra.mrb[0].mxu0 %v1963
    %v2036 = vpop.f32.mrb[0].mxu0
    %v2037 = vadd.f32 %v1958, %v2036
    %v2038 = vpop.f32.mrb[0].mxu0
    %2039 = vdwg.mxu0
    %v2040 = vadd.f32 %v1852, %v2032
    %v2041 = vadd.f32 %v1853, %v2037
    %v2042 = vsel %vm217, %v2040, 0.0
    %2043 = vadd.xlane.f32.xlu0 %v2042
    %v2044 = vpop.xlane.xlu0 %2043
    %v2045 = vsel %vm217, %v2041, 0.0
    %2046 = vadd.xlane.f32.xlu0 %v2045
    %v2047 = vpop.xlane.xlu0 %2046
    %v2048 = vmul.f32 %v2044, %v998
    %v2049 = vmul.f32 %v2047, %v998
    %v2050 = vsub.f32 %v2040, %v2048
    %v2051 = vsub.f32 %v2041, %v2049
    %v2052 = vmul.f32 %v2050, %v2050
    %v2053 = vmul.f32 %v2051, %v2051
    %v2054 = vsel %vm217, %v2052, 0.0
    %2055 = vadd.xlane.f32.xlu0 %v2054
    %v2056 = vpop.xlane.xlu0 %2055
    %v2057 = vsel %vm217, %v2053, 0.0
    %2058 = vadd.xlane.f32.xlu0 %v2057
    %v2059 = vpop.xlane.xlu0 %2058
    %v2060 = vmul.f32 %v2056, %v998
    %v2061 = vmul.f32 %v2059, %v998
    %v2062 = vadd.f32 %v2060, 1e-05
    %v2063 = vadd.f32 %v2061, 1e-05
    %v2064 = vrsqrt.pop %v2062
    %v2065 = vrsqrt.pop %v2063
    %v2066 = vmul.f32 %v2050, %v2064
    %v2067 = vmul.f32 %v2051, %v2065
    %v2068 = vld [vmem:[%s2 + $0x1d8] sm:$0x1]
    %v2069 = vlaneseq
    %v2070 = vshrl.u32 %v2069, 7
    %v2071 = vsub.s32 0, %v2070
    %v2072 = vrot.slane %v2068, %v2071
    %v2073 = vmul.f32 %v2066, %v2072
    %v2074 = vmul.f32 %v2067, %v2072
    %v2075 = vld [vmem:[%s2 + $0x1d9] sm:$0x1]
    %v2076 = vlaneseq
    %v2077 = vshrl.u32 %v2076, 7
    %v2078 = vsub.s32 0, %v2077
    %v2079 = vrot.slane %v2075, %v2078
    %v2080 = vadd.f32 %v2073, %v2079
    %v2081 = vadd.f32 %v2074, %v2079
    %2082 = vst.msk [vmem:[#allocation2] sm:$0xff] %vm217, %v2080
    %2083 = vst.msk [vmem:[#allocation2 + $0x8] sm:$0xff] %vm217, %v2081
    // Predicated region
    $region14: #{encoder_forward.1} parent=1 // pred_check
      _
    $region15: #{encoder_forward.1} parent=1 // pred_check_branch
      %2085 = sbr.rel (0) target = $region17
    $region16: #{encoder_forward.1} parent=1 // pred_region
      %s2087 = ssub.s32 256, 256
      %2088 = vsyncadd [#allocation3], %s2087
      %s2089 = sshll.u32 [#allocation2], 4
      %s2090 = int_to_ptr.vmem [resolvable:$true] %s2089
      %2095 = dma.vmem_to_hbm [thread:$0]  %s2090, 256, %s3, [#allocation3], 128, 128, 8
    $region17: #{encoder_forward.1} parent=1 // pred_fallthru
      _
    // Predicated region
    $region18: #{encoder_forward.1} parent=1 // pred_check
      _
    $region19: #{encoder_forward.1} parent=1 // pred_check_branch
      %2097 = sbr.rel (0) target = $region21
    $region20: #{encoder_forward.1} parent=1 // pred_region
      %2098 = dma.done [#allocation3], 256
    $region21: #{encoder_forward.1} parent=1 // pred_fallthru
      _
    %2099 = vsyncpa [#allocation3], 1

</llo_original>
